<compile_context>
chip_gen: v5e
topology: v5e:2x2
jax: 0.10.0
libtpu: 0.0.40
codegen_flags: <defaults>
</compile_context>

<pallas_src>
import jax
import jax.numpy as jnp
from jax import lax
from jax.experimental import pallas as pl
from jax.experimental.pallas import tpu as pltpu

# ----------------------------- model dims -----------------------------------
B = 2          # batch
CIN = 64       # num_features_in
L = 16         # sequence length
F = 256        # feature_size
NC = 2         # num_classes
NC8 = 8        # class dim padded to 8 (was 128): -360 KiB of zero weight DMA
NG = 32        # GroupNorm groups
GS = F // NG   # channels per group (8)
EPS = 1e-5

P = 20         # rows per batch block: [1 zero | L data | 3 zeros]  (multiple of 8 per 2 batches)
H = B * P      # total stacked rows (40)


# ----------------------------- Pallas kernel --------------------------------
def _cls_kernel(x_ref, w1_ref, w2_ref, w3_ref, vec_ref, gf_ref, gft_ref, o_ref):
    f32 = jnp.float32
    bf16 = jnp.bfloat16

    x = x_ref[...]                                   # (H, CIN) f32, pad rows already zero
    vec = vec_ref[...]                               # (7, F) f32
    b1, g1, be1 = vec[0:1, :], vec[1:2, :], vec[2:3, :]
    b2, g2, be2 = vec[3:4, :], vec[4:5, :], vec[5:6, :]
    b3 = vec[6:7, :NC8]                              # (1, NC8), cols >= NC are zero
    gf = gf_ref[...]                                 # (F, NG)  channel -> group one-hot (precomputed)
    gft = gft_ref[...]                               # (NG, F)  group   -> channel one-hot (precomputed)

    # Batch/data-row masks built on-core (a handful of tiny vregs; cheaper than a DMA).
    # data rows of batch b are rows b*P+1 .. b*P+L
    r_bh = lax.broadcasted_iota(jnp.int32, (B, H), 1)
    lo_bh = lax.broadcasted_iota(jnp.int32, (B, H), 0) * P + 1
    bsel = ((r_bh >= lo_bh) & (r_bh <= lo_bh + (L - 1))).astype(f32)      # (B, H)
    r_hb = lax.broadcasted_iota(jnp.int32, (H, B), 0)
    lo_hb = lax.broadcasted_iota(jnp.int32, (H, B), 1) * P + 1
    bsel_t = ((r_hb >= lo_hb) & (r_hb <= lo_hb + (L - 1))).astype(f32)    # (H, B)

    inv_n = f32(1.0 / (L * GS))

    def conv3(h, w_ref, bias):
        # Conv1d(k=3, pad=1) as three shifted K-dim matmuls.  The INPUT is rolled on the
        # XLU (sublane rotate) — wrapped rows land in zero pad rows so results equal the
        # zero-padded conv.  bf16 operands, f32 MXU accumulation.
        hc = h.astype(bf16)                                    # center tap
        hm = pltpu.roll(h, shift=1, axis=0).astype(bf16)       # row r sees h[r-1]
        hp = pltpu.roll(h, shift=H - 1, axis=0).astype(bf16)   # row r sees h[r+1]
        acc = jnp.dot(hm, w_ref[0], preferred_element_type=f32)
        acc = acc + jnp.dot(hc, w_ref[1], preferred_element_type=f32)
        acc = acc + jnp.dot(hp, w_ref[2], preferred_element_type=f32)
        return acc + bias

    def groupnorm_relu(h, gamma, beta):
        # Per-batch GroupNorm over the stacked rows (stats only over data rows),
        # fused to a few tiny f32 matmuls.  Single-pass E[x^2]-E[x]^2 variance, clamped.
        s_sum = jnp.dot(bsel, h, preferred_element_type=f32)            # (B, F)
        s_sq = jnp.dot(bsel, h * h, preferred_element_type=f32)         # (B, F)
        g_sum = jnp.dot(s_sum, gf, preferred_element_type=f32)          # (B, NG)
        g_sq = jnp.dot(s_sq, gf, preferred_element_type=f32)            # (B, NG)
        mean = g_sum * inv_n
        var = jnp.maximum(g_sq * inv_n - mean * mean, 0.0)              # biased var, >= 0
        inv = lax.rsqrt(var + EPS)
        mean_c = jnp.dot(mean, gft, preferred_element_type=f32)         # (B, F)
        inv_c = jnp.dot(inv, gft, preferred_element_type=f32)           # (B, F)
        scale = inv_c * gamma                                           # (B, F)
        shift = beta - mean_c * scale                                   # (B, F)
        row_scale = jnp.dot(bsel_t, scale, preferred_element_type=f32)  # (H, F)
        row_shift = jnp.dot(bsel_t, shift, preferred_element_type=f32)  # (H, F)
        # pad rows get scale = shift = 0, so they come out exactly zero ->
        # correct zero padding for the next conv with no extra masking.
        return jnp.maximum(h * row_scale + row_shift, 0.0)

    h1 = groupnorm_relu(conv3(x, w1_ref, b1), g1, be1)                   # (H, F)
    h2 = groupnorm_relu(conv3(h1, w2_ref, b2), g2, be2)                  # (H, F)
    h3 = conv3(h2, w3_ref, b3)                                           # (H, NC8)
    o_ref[...] = jax.nn.sigmoid(h3).astype(o_ref.dtype)


# ----------------------------- one-time weight packing ------------------------
def prepare_params(params):
    """Hoisted, one-time preprocessing: call once, reuse the packed tuple per call."""
    (w1, b1, g1, be1, w2, b2, g2, be2, w3, b3) = params
    bf16 = jnp.bfloat16
    # conv weights: PyTorch (Cout, Cin, 3) -> (3, Cin, Cout), bf16
    w1k = jnp.transpose(w1, (2, 1, 0)).astype(bf16)                      # (3, CIN, F)
    w2k = jnp.transpose(w2, (2, 1, 0)).astype(bf16)                      # (3, F, F)
    w3p = jnp.pad(w3, ((0, NC8 - NC), (0, 0), (0, 0)))                   # (NC8, F, 3), zero cols
    w3k = jnp.transpose(w3p, (2, 1, 0)).astype(bf16)                     # (3, F, NC8)
    # per-channel vectors bundled into one f32 DMA stream
    vecs = jnp.stack([b1, g1, be1, b2, g2, be2,
                      jnp.pad(b3, (0, F - NC))], axis=0).astype(jnp.float32)  # (7, F)
    # GroupNorm channel<->group one-hots, precomputed once (no per-call iota build)
    gf = (jnp.arange(F)[:, None] // GS ==
          jnp.arange(NG)[None, :]).astype(jnp.float32)                   # (F, NG)
    gft = jnp.asarray(gf.T)                                              # (NG, F)
    return (w1k, w2k, w3k, vecs, gf, gft)


# ----------------------------- per-call wrapper --------------------------------
@jax.jit
def classification_model_pallas(x, packed):
    """x: (B, CIN, L) float32 (PyTorch NCL layout). packed = prepare_params(...).
    Returns (B, L, NC)."""
    w1k, w2k, w3k, vecs, gf, gft = packed

    # channels-last, per-batch zero padding, batches stacked along rows
    x_ld = jnp.transpose(x, (0, 2, 1))                                   # (B, L, CIN)
    x_stack = jnp.pad(x_ld, ((0, 0), (1, P - L - 1), (0, 0))).reshape(H, CIN)

    bytes_accessed = (H * CIN * 4 + 3 * (CIN * F + F * F + F * NC8) * 2
                      + 7 * F * 4 + 2 * F * NG * 4 + H * NC8 * 4)
    cost = pl.CostEstimate(
        flops=2 * H * 3 * (CIN * F + F * F + F * NC8),
        transcendentals=H * NC8 + 4 * B * NG,
        bytes_accessed=bytes_accessed)

    out_slab = pl.pallas_call(
        _cls_kernel,
        out_shape=jax.ShapeDtypeStruct((H, NC8), jnp.float32),
        cost_estimate=cost,
    )(x_stack, w1k, w2k, w3k, vecs, gf, gft)

    # drop per-batch pad rows and padded class columns -> (B, L, NC)
    return out_slab.reshape(B, P, NC8)[:, 1:1 + L, :NC]


# ----------------------------- pure-JAX reference ----------------------------
def classification_model_ref(x, params):
    (w1, b1, g1, be1, w2, b2, g2, be2, w3, b3) = params

    def conv1d(h, w, b):
        y = lax.conv_general_dilated(h, w, window_strides=(1,), padding=((1, 1),),
                                     dimension_numbers=("NCH", "OIH", "NCH"))
        return y + b[None, :, None]

    def gn(h, gamma, beta):
        Bn, C, Ln = h.shape
        hr = h.reshape(Bn, NG, (C // NG) * Ln)
        mean = hr.mean(-1, keepdims=True)
        var = hr.var(-1, keepdims=True)
        hn = ((hr - mean) / jnp.sqrt(var + EPS)).reshape(Bn, C, Ln)
        return hn * gamma[None, :, None] + beta[None, :, None]

    out = jax.nn.relu(gn(conv1d(x, w1, b1), g1, be1))
    out = jax.nn.relu(gn(conv1d(out, w2, b2), g2, be2))
    out = jax.nn.sigmoid(conv1d(out, w3, b3))
    out1 = jnp.transpose(out, (0, 2, 1))                                 # (B, L, NC)
    return out1.reshape(x.shape[0], -1, NC)


# ----------------------------- main -------------------------------------------
if __name__ == "__main__":
    key = jax.random.PRNGKey(0)
    ks = jax.random.split(key, 12)
    scale = 0.1
    x = jax.random.normal(ks[0], (B, CIN, L), jnp.float32)

    params = (
        scale * jax.random.normal(ks[1], (F, CIN, 3), jnp.float32),   # conv1 weight
        scale * jax.random.normal(ks[2], (F,), jnp.float32),          # conv1 bias
        1.0 + scale * jax.random.normal(ks[3], (F,), jnp.float32),    # norm1 gamma
        scale * jax.random.normal(ks[4], (F,), jnp.float32),          # norm1 beta
        scale * jax.random.normal(ks[5], (F, F, 3), jnp.float32),     # conv2 weight
        scale * jax.random.normal(ks[6], (F,), jnp.float32),          # conv2 bias
        1.0 + scale * jax.random.normal(ks[7], (F,), jnp.float32),    # norm2 gamma
        scale * jax.random.normal(ks[8], (F,), jnp.float32),          # norm2 beta
        scale * jax.random.normal(ks[9], (NC, F, 3), jnp.float32),    # output weight
        scale * jax.random.normal(ks[10], (NC,), jnp.float32),        # output bias
    )

    packed = prepare_params(params)                                   # hoisted, once

    out = jax.block_until_ready(classification_model_pallas(x, packed))
    ref = jax.block_until_ready(classification_model_ref(x, params))

    assert out.shape == (B, L, NC), out.shape
    max_err = float(jnp.max(jnp.abs(out - ref)))
    # bf16 conv weights/activations (f32 accumulate) -> relaxed tolerance
    assert jnp.allclose(out, ref, rtol=2e-2, atol=2e-2), max_err
    print("KERNEL_OK")
</pallas_src>

<mosaic_0001>
module attributes {stable_mosaic.version = 11 : i64} {
  func.func @_cls_kernel(%arg0: memref<40x64xf32, #tpu.memory_space<vmem>>, %arg1: memref<3x64x256xbf16, #tpu.memory_space<vmem>>, %arg2: memref<3x256x256xbf16, #tpu.memory_space<vmem>>, %arg3: memref<3x256x8xbf16, #tpu.memory_space<vmem>>, %arg4: memref<7x256xf32, #tpu.memory_space<vmem>>, %arg5: memref<256x32xf32, #tpu.memory_space<vmem>>, %arg6: memref<32x256xf32, #tpu.memory_space<vmem>>, %arg7: memref<40x8xf32, #tpu.memory_space<vmem>>) attributes {dimension_semantics = [], scalar_prefetch = 0 : i64, scratch_operands = 0 : i64, tpu.core_type = #tpu.core_type<tc>} {
    %c0 = arith.constant 0 : index
    %c0_0 = arith.constant 0 : index
    %0 = vector.load %arg0[%c0, %c0_0] : memref<40x64xf32, #tpu.memory_space<vmem>>, vector<40x64xf32>
    %c0_1 = arith.constant 0 : index
    %c0_2 = arith.constant 0 : index
    %1 = vector.load %arg4[%c0_1, %c0_2] : memref<7x256xf32, #tpu.memory_space<vmem>>, vector<7x256xf32>
    %2 = vector.extract_strided_slice %1 {offsets = [0, 0], sizes = [1, 256], strides = [1, 1]} : vector<7x256xf32> to vector<1x256xf32>
    %3 = vector.extract_strided_slice %1 {offsets = [1, 0], sizes = [1, 256], strides = [1, 1]} : vector<7x256xf32> to vector<1x256xf32>
    %4 = vector.extract_strided_slice %1 {offsets = [2, 0], sizes = [1, 256], strides = [1, 1]} : vector<7x256xf32> to vector<1x256xf32>
    %5 = vector.extract_strided_slice %1 {offsets = [3, 0], sizes = [1, 256], strides = [1, 1]} : vector<7x256xf32> to vector<1x256xf32>
    %6 = vector.extract_strided_slice %1 {offsets = [4, 0], sizes = [1, 256], strides = [1, 1]} : vector<7x256xf32> to vector<1x256xf32>
    %7 = vector.extract_strided_slice %1 {offsets = [5, 0], sizes = [1, 256], strides = [1, 1]} : vector<7x256xf32> to vector<1x256xf32>
    %8 = vector.extract_strided_slice %1 {offsets = [6, 0], sizes = [1, 8], strides = [1, 1]} : vector<7x256xf32> to vector<1x8xf32>
    %c0_3 = arith.constant 0 : index
    %c0_4 = arith.constant 0 : index
    %9 = vector.load %arg5[%c0_3, %c0_4] : memref<256x32xf32, #tpu.memory_space<vmem>>, vector<256x32xf32>
    %c0_5 = arith.constant 0 : index
    %c0_6 = arith.constant 0 : index
    %10 = vector.load %arg6[%c0_5, %c0_6] : memref<32x256xf32, #tpu.memory_space<vmem>>, vector<32x256xf32>
    %11 = tpu.iota {dimensions = array<i32: 1>} : vector<2x40xi32>
    %12 = tpu.iota {dimensions = array<i32: 0>} : vector<2x40xi32>
    %c20_i32 = arith.constant 20 : i32
    %13 = vector.broadcast %c20_i32 : i32 to vector<2x40xi32>
    %14 = arith.muli %12, %13 : vector<2x40xi32>
    %c1_i32 = arith.constant 1 : i32
    %15 = vector.broadcast %c1_i32 : i32 to vector<2x40xi32>
    %16 = arith.addi %14, %15 : vector<2x40xi32>
    %17 = arith.cmpi sge, %11, %16 : vector<2x40xi32>
    %c15_i32 = arith.constant 15 : i32
    %18 = vector.broadcast %c15_i32 : i32 to vector<2x40xi32>
    %19 = arith.addi %16, %18 : vector<2x40xi32>
    %20 = arith.cmpi sle, %11, %19 : vector<2x40xi32>
    %21 = arith.andi %17, %20 : vector<2x40xi1>
    %22 = arith.extui %21 : vector<2x40xi1> to vector<2x40xi32>
    %23 = arith.sitofp %22 : vector<2x40xi32> to vector<2x40xf32>
    %24 = tpu.iota {dimensions = array<i32: 0>} : vector<40x2xi32>
    %25 = tpu.iota {dimensions = array<i32: 1>} : vector<40x2xi32>
    %c20_i32_7 = arith.constant 20 : i32
    %26 = vector.broadcast %c20_i32_7 : i32 to vector<40x2xi32>
    %27 = arith.muli %25, %26 : vector<40x2xi32>
    %c1_i32_8 = arith.constant 1 : i32
    %28 = vector.broadcast %c1_i32_8 : i32 to vector<40x2xi32>
    %29 = arith.addi %27, %28 : vector<40x2xi32>
    %30 = arith.cmpi sge, %24, %29 : vector<40x2xi32>
    %c15_i32_9 = arith.constant 15 : i32
    %31 = vector.broadcast %c15_i32_9 : i32 to vector<40x2xi32>
    %32 = arith.addi %29, %31 : vector<40x2xi32>
    %33 = arith.cmpi sle, %24, %32 : vector<40x2xi32>
    %34 = arith.andi %30, %33 : vector<40x2xi1>
    %35 = arith.extui %34 : vector<40x2xi1> to vector<40x2xi32>
    %36 = arith.sitofp %35 : vector<40x2xi32> to vector<40x2xf32>
    %37 = arith.truncf %0 : vector<40x64xf32> to vector<40x64xbf16>
    %c1_i32_10 = arith.constant 1 : i32
    %38 = tpu.dynamic_rotate %0 by %c1_i32_10 dim 0 : vector<40x64xf32>, i32 -> vector<40x64xf32>
    %39 = arith.truncf %38 : vector<40x64xf32> to vector<40x64xbf16>
    %c39_i32 = arith.constant 39 : i32
    %40 = tpu.dynamic_rotate %0 by %c39_i32 dim 0 : vector<40x64xf32>, i32 -> vector<40x64xf32>
    %41 = arith.truncf %40 : vector<40x64xf32> to vector<40x64xbf16>
    %c0_11 = arith.constant 0 : index
    %c0_12 = arith.constant 0 : index
    %c0_13 = arith.constant 0 : index
    %42 = vector.load %arg1[%c0_11, %c0_12, %c0_13] : memref<3x64x256xbf16, #tpu.memory_space<vmem>>, vector<1x64x256xbf16>
    %43 = vector.shape_cast %42 : vector<1x64x256xbf16> to vector<64x256xbf16>
    %cst = arith.constant dense<0.000000e+00> : vector<40x256xf32>
    %44 = tpu.matmul %39, %43, %cst {dimension_numbers = #tpu.dot_dimension_numbers<[1], [0], [0], [1], [0, 0, 1, 1], [], []>} : vector<40x64xbf16>, vector<64x256xbf16>, vector<40x256xf32> -> vector<40x256xf32>
    %c1 = arith.constant 1 : index
    %c0_14 = arith.constant 0 : index
    %c0_15 = arith.constant 0 : index
    %45 = vector.load %arg1[%c1, %c0_14, %c0_15] : memref<3x64x256xbf16, #tpu.memory_space<vmem>>, vector<1x64x256xbf16>
    %46 = vector.shape_cast %45 : vector<1x64x256xbf16> to vector<64x256xbf16>
    %cst_16 = arith.constant dense<0.000000e+00> : vector<40x256xf32>
    %47 = tpu.matmul %37, %46, %cst_16 {dimension_numbers = #tpu.dot_dimension_numbers<[1], [0], [0], [1], [0, 0, 1, 1], [], []>} : vector<40x64xbf16>, vector<64x256xbf16>, vector<40x256xf32> -> vector<40x256xf32>
    %48 = arith.addf %44, %47 : vector<40x256xf32>
    %c2 = arith.constant 2 : index
    %c0_17 = arith.constant 0 : index
    %c0_18 = arith.constant 0 : index
    %49 = vector.load %arg1[%c2, %c0_17, %c0_18] : memref<3x64x256xbf16, #tpu.memory_space<vmem>>, vector<1x64x256xbf16>
    %50 = vector.shape_cast %49 : vector<1x64x256xbf16> to vector<64x256xbf16>
    %cst_19 = arith.constant dense<0.000000e+00> : vector<40x256xf32>
    %51 = tpu.matmul %41, %50, %cst_19 {dimension_numbers = #tpu.dot_dimension_numbers<[1], [0], [0], [1], [0, 0, 1, 1], [], []>} : vector<40x64xbf16>, vector<64x256xbf16>, vector<40x256xf32> -> vector<40x256xf32>
    %52 = arith.addf %48, %51 : vector<40x256xf32>
    %53 = vector.broadcast %2 : vector<1x256xf32> to vector<40x256xf32>
    %54 = arith.addf %52, %53 : vector<40x256xf32>
    %cst_20 = arith.constant dense<0.000000e+00> : vector<2x256xf32>
    %55 = tpu.matmul %23, %54, %cst_20 {dimension_numbers = #tpu.dot_dimension_numbers<[1], [0], [0], [1], [0, 0, 1, 1], [], []>} : vector<2x40xf32>, vector<40x256xf32>, vector<2x256xf32> -> vector<2x256xf32>
    %56 = arith.mulf %54, %54 : vector<40x256xf32>
    %cst_21 = arith.constant dense<0.000000e+00> : vector<2x256xf32>
    %57 = tpu.matmul %23, %56, %cst_21 {dimension_numbers = #tpu.dot_dimension_numbers<[1], [0], [0], [1], [0, 0, 1, 1], [], []>} : vector<2x40xf32>, vector<40x256xf32>, vector<2x256xf32> -> vector<2x256xf32>
    %cst_22 = arith.constant dense<0.000000e+00> : vector<2x32xf32>
    %58 = tpu.matmul %55, %9, %cst_22 {dimension_numbers = #tpu.dot_dimension_numbers<[1], [0], [0], [1], [0, 0, 1, 1], [], []>} : vector<2x256xf32>, vector<256x32xf32>, vector<2x32xf32> -> vector<2x32xf32>
    %cst_23 = arith.constant dense<0.000000e+00> : vector<2x32xf32>
    %59 = tpu.matmul %57, %9, %cst_23 {dimension_numbers = #tpu.dot_dimension_numbers<[1], [0], [0], [1], [0, 0, 1, 1], [], []>} : vector<2x256xf32>, vector<256x32xf32>, vector<2x32xf32> -> vector<2x32xf32>
    %cst_24 = arith.constant 7.812500e-03 : f32
    %60 = vector.broadcast %cst_24 : f32 to vector<2x32xf32>
    %61 = arith.mulf %58, %60 : vector<2x32xf32>
    %cst_25 = arith.constant 7.812500e-03 : f32
    %62 = vector.broadcast %cst_25 : f32 to vector<2x32xf32>
    %63 = arith.mulf %59, %62 : vector<2x32xf32>
    %64 = arith.mulf %61, %61 : vector<2x32xf32>
    %65 = arith.subf %63, %64 : vector<2x32xf32>
    %cst_26 = arith.constant 0.000000e+00 : f32
    %66 = vector.broadcast %cst_26 : f32 to vector<2x32xf32>
    %67 = arith.maximumf %65, %66 : vector<2x32xf32>
    %cst_27 = arith.constant 9.99999974E-6 : f32
    %68 = vector.broadcast %cst_27 : f32 to vector<2x32xf32>
    %69 = arith.addf %67, %68 : vector<2x32xf32>
    %70 = math.rsqrt %69 : vector<2x32xf32>
    %cst_28 = arith.constant dense<0.000000e+00> : vector<2x256xf32>
    %71 = tpu.matmul %61, %10, %cst_28 {dimension_numbers = #tpu.dot_dimension_numbers<[1], [0], [0], [1], [0, 0, 1, 1], [], []>} : vector<2x32xf32>, vector<32x256xf32>, vector<2x256xf32> -> vector<2x256xf32>
    %cst_29 = arith.constant dense<0.000000e+00> : vector<2x256xf32>
    %72 = tpu.matmul %70, %10, %cst_29 {dimension_numbers = #tpu.dot_dimension_numbers<[1], [0], [0], [1], [0, 0, 1, 1], [], []>} : vector<2x32xf32>, vector<32x256xf32>, vector<2x256xf32> -> vector<2x256xf32>
    %73 = vector.broadcast %3 : vector<1x256xf32> to vector<2x256xf32>
    %74 = arith.mulf %72, %73 : vector<2x256xf32>
    %75 = arith.mulf %71, %74 : vector<2x256xf32>
    %76 = vector.broadcast %4 : vector<1x256xf32> to vector<2x256xf32>
    %77 = arith.subf %76, %75 : vector<2x256xf32>
    %cst_30 = arith.constant dense<0.000000e+00> : vector<40x256xf32>
    %78 = tpu.matmul %36, %74, %cst_30 {dimension_numbers = #tpu.dot_dimension_numbers<[1], [0], [0], [1], [0, 0, 1, 1], [], []>} : vector<40x2xf32>, vector<2x256xf32>, vector<40x256xf32> -> vector<40x256xf32>
    %cst_31 = arith.constant dense<0.000000e+00> : vector<40x256xf32>
    %79 = tpu.matmul %36, %77, %cst_31 {dimension_numbers = #tpu.dot_dimension_numbers<[1], [0], [0], [1], [0, 0, 1, 1], [], []>} : vector<40x2xf32>, vector<2x256xf32>, vector<40x256xf32> -> vector<40x256xf32>
    %80 = arith.mulf %54, %78 : vector<40x256xf32>
    %81 = arith.addf %80, %79 : vector<40x256xf32>
    %cst_32 = arith.constant 0.000000e+00 : f32
    %82 = vector.broadcast %cst_32 : f32 to vector<40x256xf32>
    %83 = arith.maximumf %81, %82 : vector<40x256xf32>
    %84 = arith.truncf %83 : vector<40x256xf32> to vector<40x256xbf16>
    %c1_i32_33 = arith.constant 1 : i32
    %85 = tpu.dynamic_rotate %83 by %c1_i32_33 dim 0 : vector<40x256xf32>, i32 -> vector<40x256xf32>
    %86 = arith.truncf %85 : vector<40x256xf32> to vector<40x256xbf16>
    %c39_i32_34 = arith.constant 39 : i32
    %87 = tpu.dynamic_rotate %83 by %c39_i32_34 dim 0 : vector<40x256xf32>, i32 -> vector<40x256xf32>
    %88 = arith.truncf %87 : vector<40x256xf32> to vector<40x256xbf16>
    %c0_35 = arith.constant 0 : index
    %c0_36 = arith.constant 0 : index
    %c0_37 = arith.constant 0 : index
    %89 = vector.load %arg2[%c0_35, %c0_36, %c0_37] : memref<3x256x256xbf16, #tpu.memory_space<vmem>>, vector<1x256x256xbf16>
    %90 = vector.shape_cast %89 : vector<1x256x256xbf16> to vector<256x256xbf16>
    %cst_38 = arith.constant dense<0.000000e+00> : vector<40x256xf32>
    %91 = tpu.matmul %86, %90, %cst_38 {dimension_numbers = #tpu.dot_dimension_numbers<[1], [0], [0], [1], [0, 0, 1, 1], [], []>} : vector<40x256xbf16>, vector<256x256xbf16>, vector<40x256xf32> -> vector<40x256xf32>
    %c1_39 = arith.constant 1 : index
    %c0_40 = arith.constant 0 : index
    %c0_41 = arith.constant 0 : index
    %92 = vector.load %arg2[%c1_39, %c0_40, %c0_41] : memref<3x256x256xbf16, #tpu.memory_space<vmem>>, vector<1x256x256xbf16>
    %93 = vector.shape_cast %92 : vector<1x256x256xbf16> to vector<256x256xbf16>
    %cst_42 = arith.constant dense<0.000000e+00> : vector<40x256xf32>
    %94 = tpu.matmul %84, %93, %cst_42 {dimension_numbers = #tpu.dot_dimension_numbers<[1], [0], [0], [1], [0, 0, 1, 1], [], []>} : vector<40x256xbf16>, vector<256x256xbf16>, vector<40x256xf32> -> vector<40x256xf32>
    %95 = arith.addf %91, %94 : vector<40x256xf32>
    %c2_43 = arith.constant 2 : index
    %c0_44 = arith.constant 0 : index
    %c0_45 = arith.constant 0 : index
    %96 = vector.load %arg2[%c2_43, %c0_44, %c0_45] : memref<3x256x256xbf16, #tpu.memory_space<vmem>>, vector<1x256x256xbf16>
    %97 = vector.shape_cast %96 : vector<1x256x256xbf16> to vector<256x256xbf16>
    %cst_46 = arith.constant dense<0.000000e+00> : vector<40x256xf32>
    %98 = tpu.matmul %88, %97, %cst_46 {dimension_numbers = #tpu.dot_dimension_numbers<[1], [0], [0], [1], [0, 0, 1, 1], [], []>} : vector<40x256xbf16>, vector<256x256xbf16>, vector<40x256xf32> -> vector<40x256xf32>
    %99 = arith.addf %95, %98 : vector<40x256xf32>
    %100 = vector.broadcast %5 : vector<1x256xf32> to vector<40x256xf32>
    %101 = arith.addf %99, %100 : vector<40x256xf32>
    %cst_47 = arith.constant dense<0.000000e+00> : vector<2x256xf32>
    %102 = tpu.matmul %23, %101, %cst_47 {dimension_numbers = #tpu.dot_dimension_numbers<[1], [0], [0], [1], [0, 0, 1, 1], [], []>} : vector<2x40xf32>, vector<40x256xf32>, vector<2x256xf32> -> vector<2x256xf32>
    %103 = arith.mulf %101, %101 : vector<40x256xf32>
    %cst_48 = arith.constant dense<0.000000e+00> : vector<2x256xf32>
    %104 = tpu.matmul %23, %103, %cst_48 {dimension_numbers = #tpu.dot_dimension_numbers<[1], [0], [0], [1], [0, 0, 1, 1], [], []>} : vector<2x40xf32>, vector<40x256xf32>, vector<2x256xf32> -> vector<2x256xf32>
    %cst_49 = arith.constant dense<0.000000e+00> : vector<2x32xf32>
    %105 = tpu.matmul %102, %9, %cst_49 {dimension_numbers = #tpu.dot_dimension_numbers<[1], [0], [0], [1], [0, 0, 1, 1], [], []>} : vector<2x256xf32>, vector<256x32xf32>, vector<2x32xf32> -> vector<2x32xf32>
    %cst_50 = arith.constant dense<0.000000e+00> : vector<2x32xf32>
    %106 = tpu.matmul %104, %9, %cst_50 {dimension_numbers = #tpu.dot_dimension_numbers<[1], [0], [0], [1], [0, 0, 1, 1], [], []>} : vector<2x256xf32>, vector<256x32xf32>, vector<2x32xf32> -> vector<2x32xf32>
    %cst_51 = arith.constant 7.812500e-03 : f32
    %107 = vector.broadcast %cst_51 : f32 to vector<2x32xf32>
    %108 = arith.mulf %105, %107 : vector<2x32xf32>
    %cst_52 = arith.constant 7.812500e-03 : f32
    %109 = vector.broadcast %cst_52 : f32 to vector<2x32xf32>
    %110 = arith.mulf %106, %109 : vector<2x32xf32>
    %111 = arith.mulf %108, %108 : vector<2x32xf32>
    %112 = arith.subf %110, %111 : vector<2x32xf32>
    %cst_53 = arith.constant 0.000000e+00 : f32
    %113 = vector.broadcast %cst_53 : f32 to vector<2x32xf32>
    %114 = arith.maximumf %112, %113 : vector<2x32xf32>
    %cst_54 = arith.constant 9.99999974E-6 : f32
    %115 = vector.broadcast %cst_54 : f32 to vector<2x32xf32>
    %116 = arith.addf %114, %115 : vector<2x32xf32>
    %117 = math.rsqrt %116 : vector<2x32xf32>
    %cst_55 = arith.constant dense<0.000000e+00> : vector<2x256xf32>
    %118 = tpu.matmul %108, %10, %cst_55 {dimension_numbers = #tpu.dot_dimension_numbers<[1], [0], [0], [1], [0, 0, 1, 1], [], []>} : vector<2x32xf32>, vector<32x256xf32>, vector<2x256xf32> -> vector<2x256xf32>
    %cst_56 = arith.constant dense<0.000000e+00> : vector<2x256xf32>
    %119 = tpu.matmul %117, %10, %cst_56 {dimension_numbers = #tpu.dot_dimension_numbers<[1], [0], [0], [1], [0, 0, 1, 1], [], []>} : vector<2x32xf32>, vector<32x256xf32>, vector<2x256xf32> -> vector<2x256xf32>
    %120 = vector.broadcast %6 : vector<1x256xf32> to vector<2x256xf32>
    %121 = arith.mulf %119, %120 : vector<2x256xf32>
    %122 = arith.mulf %118, %121 : vector<2x256xf32>
    %123 = vector.broadcast %7 : vector<1x256xf32> to vector<2x256xf32>
    %124 = arith.subf %123, %122 : vector<2x256xf32>
    %cst_57 = arith.constant dense<0.000000e+00> : vector<40x256xf32>
    %125 = tpu.matmul %36, %121, %cst_57 {dimension_numbers = #tpu.dot_dimension_numbers<[1], [0], [0], [1], [0, 0, 1, 1], [], []>} : vector<40x2xf32>, vector<2x256xf32>, vector<40x256xf32> -> vector<40x256xf32>
    %cst_58 = arith.constant dense<0.000000e+00> : vector<40x256xf32>
    %126 = tpu.matmul %36, %124, %cst_58 {dimension_numbers = #tpu.dot_dimension_numbers<[1], [0], [0], [1], [0, 0, 1, 1], [], []>} : vector<40x2xf32>, vector<2x256xf32>, vector<40x256xf32> -> vector<40x256xf32>
    %127 = arith.mulf %101, %125 : vector<40x256xf32>
    %128 = arith.addf %127, %126 : vector<40x256xf32>
    %cst_59 = arith.constant 0.000000e+00 : f32
    %129 = vector.broadcast %cst_59 : f32 to vector<40x256xf32>
    %130 = arith.maximumf %128, %129 : vector<40x256xf32>
    %131 = arith.truncf %130 : vector<40x256xf32> to vector<40x256xbf16>
    %c1_i32_60 = arith.constant 1 : i32
    %132 = tpu.dynamic_rotate %130 by %c1_i32_60 dim 0 : vector<40x256xf32>, i32 -> vector<40x256xf32>
    %133 = arith.truncf %132 : vector<40x256xf32> to vector<40x256xbf16>
    %c39_i32_61 = arith.constant 39 : i32
    %134 = tpu.dynamic_rotate %130 by %c39_i32_61 dim 0 : vector<40x256xf32>, i32 -> vector<40x256xf32>
    %135 = arith.truncf %134 : vector<40x256xf32> to vector<40x256xbf16>
    %c0_62 = arith.constant 0 : index
    %c0_63 = arith.constant 0 : index
    %c0_64 = arith.constant 0 : index
    %136 = vector.load %arg3[%c0_62, %c0_63, %c0_64] : memref<3x256x8xbf16, #tpu.memory_space<vmem>>, vector<1x256x8xbf16>
    %137 = vector.shape_cast %136 : vector<1x256x8xbf16> to vector<256x8xbf16>
    %cst_65 = arith.constant dense<0.000000e+00> : vector<40x8xf32>
    %138 = tpu.matmul %133, %137, %cst_65 {dimension_numbers = #tpu.dot_dimension_numbers<[1], [0], [0], [1], [0, 0, 1, 1], [], []>} : vector<40x256xbf16>, vector<256x8xbf16>, vector<40x8xf32> -> vector<40x8xf32>
    %c1_66 = arith.constant 1 : index
    %c0_67 = arith.constant 0 : index
    %c0_68 = arith.constant 0 : index
    %139 = vector.load %arg3[%c1_66, %c0_67, %c0_68] : memref<3x256x8xbf16, #tpu.memory_space<vmem>>, vector<1x256x8xbf16>
    %140 = vector.shape_cast %139 : vector<1x256x8xbf16> to vector<256x8xbf16>
    %cst_69 = arith.constant dense<0.000000e+00> : vector<40x8xf32>
    %141 = tpu.matmul %131, %140, %cst_69 {dimension_numbers = #tpu.dot_dimension_numbers<[1], [0], [0], [1], [0, 0, 1, 1], [], []>} : vector<40x256xbf16>, vector<256x8xbf16>, vector<40x8xf32> -> vector<40x8xf32>
    %142 = arith.addf %138, %141 : vector<40x8xf32>
    %c2_70 = arith.constant 2 : index
    %c0_71 = arith.constant 0 : index
    %c0_72 = arith.constant 0 : index
    %143 = vector.load %arg3[%c2_70, %c0_71, %c0_72] : memref<3x256x8xbf16, #tpu.memory_space<vmem>>, vector<1x256x8xbf16>
    %144 = vector.shape_cast %143 : vector<1x256x8xbf16> to vector<256x8xbf16>
    %cst_73 = arith.constant dense<0.000000e+00> : vector<40x8xf32>
    %145 = tpu.matmul %135, %144, %cst_73 {dimension_numbers = #tpu.dot_dimension_numbers<[1], [0], [0], [1], [0, 0, 1, 1], [], []>} : vector<40x256xbf16>, vector<256x8xbf16>, vector<40x8xf32> -> vector<40x8xf32>
    %146 = arith.addf %142, %145 : vector<40x8xf32>
    %147 = vector.broadcast %8 : vector<1x8xf32> to vector<40x8xf32>
    %148 = arith.addf %146, %147 : vector<40x8xf32>
    %149 = arith.negf %148 : vector<40x8xf32>
    %150 = math.exp %149 : vector<40x8xf32>
    %cst_74 = arith.constant 1.000000e+00 : f32
    %151 = vector.broadcast %cst_74 : f32 to vector<40x8xf32>
    %152 = arith.addf %151, %150 : vector<40x8xf32>
    %153 = arith.divf %151, %152 : vector<40x8xf32>
    %c0_75 = arith.constant 0 : index
    %c0_76 = arith.constant 0 : index
    %154 = vector.load %arg7[%c0_75, %c0_76] : memref<40x8xf32, #tpu.memory_space<vmem>>, vector<40x8xf32>
    tpu.vector_store %arg7[%c0_75, %c0_76], %153 {strides = array<i32>} : memref<40x8xf32, #tpu.memory_space<vmem>>, vector<40x8xf32>,
    return
  }
}

</mosaic_0001>

<llo_original>
// kernel: classification_model_pallas.1
$region0: #{classification_model_pallas.1}
  #allocation0 [shape = 'u32[]', space=smem, size = 0x4, offset = 0x4, fixed_abs, tag = 'smem constant byte address 0x4 - core index']
  #allocation1 [shape = 'u32[72,128]{1,0:T(1,128)}', space=vmem, size = 0x9000, scoped, tag = 'internal scratch']
  %s0 = inlined_call_operand.vmem [shape: f32[40,64], index: 0, kind: input, shape index: {}]
  %s1 = inlined_call_operand.hbm [shape: bf16[3,64,256], index: 1, kind: input, shape index: {}]
  %s2 = inlined_call_operand.vmem [shape: bf16[3,256,256], index: 2, kind: input, shape index: {}]
  %s3 = inlined_call_operand.vmem [shape: bf16[3,256,8], index: 3, kind: input, shape index: {}]
  %s4 = inlined_call_operand.hbm [shape: f32[7,256], index: 4, kind: input, shape index: {}]
  %s5 = inlined_call_operand.vmem [shape: f32[256,32], index: 5, kind: input, shape index: {}]
  %s6 = inlined_call_operand.vmem [shape: f32[32,256], index: 6, kind: input, shape index: {}]
  %s7 = inlined_call_operand.vmem [shape: f32[40,8], index: 7, kind: output, shape index: {}]
  %s8 = sld [smem:[#allocation0]]
  $region46: #{classification_model_pallas.1} parent=0
    _
  %s10 = ssub.s32 1, %s8
  %s11 = scalar_select 0, %s10, %s8
  $region1: #{classification_model_pallas.1} parent=0
    #allocation2 [shape = 'u8[98304]{0}', space=vmem, size = 0x18000, scoped, tag = 'input window, operand 1, single buffered']
    #allocation3 [shape = 's32[1]{0}', space=sflag, size = 0x4, scoped, tag = 'scoped memory for classification_model_pallas.1']
    #allocation4 [shape = 'u8[8192]{0}', space=vmem, size = 0x2000, scoped, tag = 'input window, operand 4, single buffered']
    #allocation5 [shape = 's32[1]{0}', space=sflag, size = 0x4, scoped, tag = 'scoped memory for classification_model_pallas.1']
    %12 = vsyncpa [#allocation3], 0
    %13 = vsyncpa [#allocation5], 0
    // Predicated region
    $region2: #{classification_model_pallas.1} parent=1 // pred_check
      _
    $region3: #{classification_model_pallas.1} parent=1 // pred_check_branch
      %15 = sbr.rel (0) target = $region5
    $region4: #{classification_model_pallas.1} parent=1 // pred_region
      _
    $region5: #{classification_model_pallas.1} parent=1 // pred_fallthru
      _
    // Predicated region
    $region6: #{classification_model_pallas.1} parent=1 // pred_check
      _
    $region7: #{classification_model_pallas.1} parent=1 // pred_check_branch
      %17 = sbr.rel (0) target = $region9
    $region8: #{classification_model_pallas.1} parent=1 // pred_region
      %19 = vsyncadd [#allocation3], 0
      %s20 = sshll.u32 %s1, 4
      %s21 = int_to_ptr.hbm [resolvable:$true] %s20
      %s22 = sshll.u32 [#allocation2], 4
      %s23 = int_to_ptr.vmem [resolvable:$true] %s22
      %28 = dma.hbm_to_vmem [thread:$0]  %s21, 3072, %s23, [#allocation3], 128, 128, 8
    $region9: #{classification_model_pallas.1} parent=1 // pred_fallthru
      _
    // Predicated region
    $region10: #{classification_model_pallas.1} parent=1 // pred_check
      _
    $region11: #{classification_model_pallas.1} parent=1 // pred_check_branch
      %30 = sbr.rel (0) target = $region13
    $region12: #{classification_model_pallas.1} parent=1 // pred_region
      _
    $region13: #{classification_model_pallas.1} parent=1 // pred_fallthru
      _
    // Predicated region
    $region14: #{classification_model_pallas.1} parent=1 // pred_check
      _
    $region15: #{classification_model_pallas.1} parent=1 // pred_check_branch
      %32 = sbr.rel (0) target = $region17
    $region16: #{classification_model_pallas.1} parent=1 // pred_region
      _
    $region17: #{classification_model_pallas.1} parent=1 // pred_fallthru
      _
    // Predicated region
    $region18: #{classification_model_pallas.1} parent=1 // pred_check
      _
    $region19: #{classification_model_pallas.1} parent=1 // pred_check_branch
      %34 = sbr.rel (0) target = $region21
    $region20: #{classification_model_pallas.1} parent=1 // pred_region
      %36 = vsyncadd [#allocation5], 0
      %s38 = sshll.u32 %s4, 4
      %s39 = int_to_ptr.hbm [resolvable:$true] %s38
      %s40 = sshll.u32 [#allocation4], 4
      %s41 = int_to_ptr.vmem [resolvable:$true] %s40
      %43 = dma.hbm_to_vmem [thread:$0]  %s39, 256, %s41, [#allocation5]
    $region21: #{classification_model_pallas.1} parent=1 // pred_fallthru
      _
    // Predicated region
    $region22: #{classification_model_pallas.1} parent=1 // pred_check
      _
    $region23: #{classification_model_pallas.1} parent=1 // pred_check_branch
      %45 = sbr.rel (0) target = $region25
    $region24: #{classification_model_pallas.1} parent=1 // pred_region
      _
    $region25: #{classification_model_pallas.1} parent=1 // pred_fallthru
      _
    // Predicated region
    $region26: #{classification_model_pallas.1} parent=1 // pred_check
      _
    $region27: #{classification_model_pallas.1} parent=1 // pred_check_branch
      %47 = sbr.rel (0) target = $region29
    $region28: #{classification_model_pallas.1} parent=1 // pred_region
      _
    $region29: #{classification_model_pallas.1} parent=1 // pred_fallthru
      _
    // Predicated region
    $region30: #{classification_model_pallas.1} parent=1 // pred_check
      _
    $region31: #{classification_model_pallas.1} parent=1 // pred_check_branch
      %49 = sbr.rel (0) target = $region33
    $region32: #{classification_model_pallas.1} parent=1 // pred_region
      %51 = dma.done [#allocation3], 3072
    $region33: #{classification_model_pallas.1} parent=1 // pred_fallthru
      _
    // Predicated region
    $region34: #{classification_model_pallas.1} parent=1 // pred_check
      _
    $region35: #{classification_model_pallas.1} parent=1 // pred_check_branch
      %53 = sbr.rel (0) target = $region37
    $region36: #{classification_model_pallas.1} parent=1 // pred_region
      %55 = dma.done [#allocation5], 256
    $region37: #{classification_model_pallas.1} parent=1 // pred_fallthru
      _
    %v57 = vld [vmem:[%s0] sm:$0xff]
    %v58 = vld [vmem:[%s0 + $0x8] sm:$0xff]
    %v59 = vld [vmem:[%s0 + $0x10] sm:$0xff]
    %v60 = vld [vmem:[%s0 + $0x18] sm:$0xff]
    %v61 = vld [vmem:[%s0 + $0x20] sm:$0xff]
    %v62 = vld [vmem:[#allocation4] sm:$0x7f]
    %v63 = vld [vmem:[#allocation4 + $0x8] sm:$0x7f]
    %v64 = vld [vmem:[%s5] sm:$0xff]
    %v65 = vld [vmem:[%s5 + $0x8] sm:$0xff]
    %v66 = vld [vmem:[%s5 + $0x10] sm:$0xff]
    %v67 = vld [vmem:[%s5 + $0x18] sm:$0xff]
    %v68 = vld [vmem:[%s5 + $0x20] sm:$0xff]
    %v69 = vld [vmem:[%s5 + $0x28] sm:$0xff]
    %v70 = vld [vmem:[%s5 + $0x30] sm:$0xff]
    %v71 = vld [vmem:[%s5 + $0x38] sm:$0xff]
    %v72 = vld [vmem:[%s5 + $0x40] sm:$0xff]
    %v73 = vld [vmem:[%s5 + $0x48] sm:$0xff]
    %v74 = vld [vmem:[%s5 + $0x50] sm:$0xff]
    %v75 = vld [vmem:[%s5 + $0x58] sm:$0xff]
    %v76 = vld [vmem:[%s5 + $0x60] sm:$0xff]
    %v77 = vld [vmem:[%s5 + $0x68] sm:$0xff]
    %v78 = vld [vmem:[%s5 + $0x70] sm:$0xff]
    %v79 = vld [vmem:[%s5 + $0x78] sm:$0xff]
    %v80 = vld [vmem:[%s5 + $0x80] sm:$0xff]
    %v81 = vld [vmem:[%s5 + $0x88] sm:$0xff]
    %v82 = vld [vmem:[%s5 + $0x90] sm:$0xff]
    %v83 = vld [vmem:[%s5 + $0x98] sm:$0xff]
    %v84 = vld [vmem:[%s5 + $0xa0] sm:$0xff]
    %v85 = vld [vmem:[%s5 + $0xa8] sm:$0xff]
    %v86 = vld [vmem:[%s5 + $0xb0] sm:$0xff]
    %v87 = vld [vmem:[%s5 + $0xb8] sm:$0xff]
    %v88 = vld [vmem:[%s5 + $0xc0] sm:$0xff]
    %v89 = vld [vmem:[%s5 + $0xc8] sm:$0xff]
    %v90 = vld [vmem:[%s5 + $0xd0] sm:$0xff]
    %v91 = vld [vmem:[%s5 + $0xd8] sm:$0xff]
    %v92 = vld [vmem:[%s5 + $0xe0] sm:$0xff]
    %v93 = vld [vmem:[%s5 + $0xe8] sm:$0xff]
    %v94 = vld [vmem:[%s5 + $0xf0] sm:$0xff]
    %v95 = vld [vmem:[%s5 + $0xf8] sm:$0xff]
    %v96 = vld [vmem:[%s6] sm:$0xff]
    %v97 = vld [vmem:[%s6 + $0x8] sm:$0xff]
    %v98 = vld [vmem:[%s6 + $0x10] sm:$0xff]
    %v99 = vld [vmem:[%s6 + $0x18] sm:$0xff]
    %v100 = vld [vmem:[%s6 + $0x20] sm:$0xff]
    %v101 = vld [vmem:[%s6 + $0x28] sm:$0xff]
    %v102 = vld [vmem:[%s6 + $0x30] sm:$0xff]
    %v103 = vld [vmem:[%s6 + $0x38] sm:$0xff]
    %v104 = vlaneseq
    %v105 = vand.u32 %v104, 127
    %v106 = vlaneseq
    %v107 = vshrl.u32 %v106, 7
    %v108 = vmul.u32 %v107, 20
    %v109 = vadd.s32 %v108, 1
    %vm110 = vcmp.ge.s32.totalorder %v105, %v109
    %v111 = vadd.s32 %v109, 15
    %vm112 = vcmp.le.s32.totalorder %v105, %v111
    %vm113 = vmand %vm110, %vm112
    %v114 = vsel %vm113, 1, 0
    %v115 = vcvt.s32.f32 %v114
    %v116 = vadd.s32 %v107, 8
    %v117 = vadd.s32 %v107, 16
    %v118 = vadd.s32 %v107, 24
    %v119 = vadd.s32 %v107, 32
    %v120 = vmul.u32 %v105, 20
    %v121 = vadd.s32 %v120, 1
    %vm122 = vcmp.ge.s32.totalorder %v107, %v121
    %vm123 = vcmp.ge.s32.totalorder %v116, %v121
    %vm124 = vcmp.ge.s32.totalorder %v117, %v121
    %vm125 = vcmp.ge.s32.totalorder %v118, %v121
    %vm126 = vcmp.ge.s32.totalorder %v119, %v121
    %v127 = vadd.s32 %v121, 15
    %vm128 = vcmp.le.s32.totalorder %v107, %v127
    %vm129 = vcmp.le.s32.totalorder %v116, %v127
    %vm130 = vcmp.le.s32.totalorder %v117, %v127
    %vm131 = vcmp.le.s32.totalorder %v118, %v127
    %vm132 = vcmp.le.s32.totalorder %v119, %v127
    %vm133 = vmand %vm122, %vm128
    %vm134 = vmand %vm123, %vm129
    %vm135 = vmand %vm124, %vm130
    %vm136 = vmand %vm125, %vm131
    %vm137 = vmand %vm126, %vm132
    %v138 = vsel %vm133, 1, 0
    %v139 = vsel %vm134, 1, 0
    %v140 = vsel %vm135, 1, 0
    %v141 = vsel %vm136, 1, 0
    %v142 = vsel %vm137, 1, 0
    %v143 = vcvt.s32.f32 %v138
    %v144 = vcvt.s32.f32 %v139
    %v145 = vcvt.s32.f32 %v140
    %v146 = vcvt.s32.f32 %v141
    %v147 = vcvt.s32.f32 %v142
    %v148 = vpack.c.bf16 %v58, %v57
    %v149 = vpack.c.bf16 %v60, %v59
    %v150 = vpack.c.bf16 %v61, %v61
    %v151 = vrot.slane %v57, 7
    %v152 = vrot.slane %v58, 7
    %v153 = vrot.slane %v59, 7
    %v154 = vrot.slane %v60, 7
    %v155 = vrot.slane %v61, 7
    %vm156 = vcmp.lt.s32.totalorder %v107, 1
    %v157 = vsel %vm156, %v154, %v155
    %v158 = vsel %vm156, %v153, %v154
    %v159 = vsel %vm156, %v152, %v153
    %v160 = vsel %vm156, %v151, %v152
    %v161 = vsel %vm156, %v155, %v151
    %v162 = vpack.c.bf16 %v160, %v161
    %v163 = vpack.c.bf16 %v158, %v159
    %v164 = vpack.c.bf16 %v157, %v157
    %v165 = vrot.slane %v57, 1
    %v166 = vrot.slane %v58, 1
    %v167 = vrot.slane %v59, 1
    %v168 = vrot.slane %v60, 1
    %v169 = vrot.slane %v61, 1
    %vm170 = vcmp.lt.s32.totalorder %v107, 7
    %v171 = vsel %vm170, %v168, %v169
    %v172 = vsel %vm170, %v167, %v168
    %v173 = vsel %vm170, %v166, %v167
    %v174 = vsel %vm170, %v165, %v166
    %v175 = vsel %vm170, %v169, %v165
    %v176 = vpack.c.bf16 %v173, %v174
    %v177 = vpack.c.bf16 %v171, %v172
    %v178 = vpack.c.bf16 %v175, %v175
    %v179 = vld [vmem:[#allocation2] sm:$0xff]
    %v180 = vld [vmem:[#allocation2 + $0x8] sm:$0xff]
    %v181 = vld [vmem:[#allocation2 + $0x10] sm:$0xff]
    %v182 = vld [vmem:[#allocation2 + $0x18] sm:$0xff]
    %v183 = vld [vmem:[#allocation2 + $0x20] sm:$0xff]
    %v184 = vld [vmem:[#allocation2 + $0x28] sm:$0xff]
    %v185 = vld [vmem:[#allocation2 + $0x30] sm:$0xff]
    %v186 = vld [vmem:[#allocation2 + $0x38] sm:$0xff]
    %s187 = scalar_lea.vmem [#allocation2], 64
    %v188 = vld [vmem:[%s187] sm:$0xff]
    %v189 = vld [vmem:[%s187 + $0x8] sm:$0xff]
    %v190 = vld [vmem:[%s187 + $0x10] sm:$0xff]
    %v191 = vld [vmem:[%s187 + $0x18] sm:$0xff]
    %v192 = vld [vmem:[%s187 + $0x20] sm:$0xff]
    %v193 = vld [vmem:[%s187 + $0x28] sm:$0xff]
    %v194 = vld [vmem:[%s187 + $0x30] sm:$0xff]
    %v195 = vld [vmem:[%s187 + $0x38] sm:$0xff]
    %v204 = vunpack.c.l.b16 %v188
    %v205 = vunpack.c.h.b16 %v188
    %v206 = vunpack.c.l.b16 %v189
    %v207 = vunpack.c.h.b16 %v189
    %v208 = vunpack.c.l.b16 %v190
    %v209 = vunpack.c.h.b16 %v190
    %v210 = vunpack.c.l.b16 %v191
    %v211 = vunpack.c.h.b16 %v191
    %v212 = vunpack.c.l.b16 %v192
    %v213 = vunpack.c.h.b16 %v192
    %v214 = vunpack.c.l.b16 %v193
    %v215 = vunpack.c.h.b16 %v193
    %v216 = vunpack.c.l.b16 %v194
    %v217 = vunpack.c.h.b16 %v194
    %v218 = vunpack.c.l.b16 %v195
    %v219 = vunpack.c.h.b16 %v195
    %v220 = vpack.c.b16 %v206, %v204
    %v221 = vpack.c.b16 %v207, %v205
    %v222 = vpack.c.b16 %v210, %v208
    %v223 = vpack.c.b16 %v211, %v209
    %v224 = vpack.c.b16 %v214, %v212
    %v225 = vpack.c.b16 %v215, %v213
    %v226 = vpack.c.b16 %v218, %v216
    %v227 = vpack.c.b16 %v219, %v217
    %vm236 = vcmask 523264
    %v238 = vsel %vm236, %v148, 0
    %v241 = vsel %vm236, %v149, 0
    %v244 = vsel %vm236, %v150, 0
    %246 = vmatpush.bf16.msra.mxu0 0
    %247 = vmatpush.bf16.msra.mxu0 0
    %248 = vmatpush.bf16.msra.mxu0 0
    %249 = vmatpush.bf16.msra.mxu0 0
    %250 = vmatpush.bf16.msra.mxu0 %v226
    %251 = vmatpush.bf16.msra.mxu0 %v224
    %252 = vmatpush.bf16.msra.mxu0 %v222
    %253 = vmatpush.bf16.msra.mxu0 %v220
    %254 = vmatmul.bf16.gmra.mxu0 %v238
    %v255 = vpop.f32.mrf.mxu0
    %v256 = vadd.f32 0.0, %v255
    %v257 = vpop.f32.mrf.mxu0
    %v258 = vadd.f32 0.0, %v257
    %259 = vmatmul.bf16.gmra.mxu0 %v241
    %v260 = vpop.f32.mrf.mxu0
    %v261 = vadd.f32 0.0, %v260
    %v262 = vpop.f32.mrf.mxu0
    %v263 = vadd.f32 0.0, %v262
    %264 = vmatmul.bf16.gmra.mxu0 %v244
    %v265 = vpop.f32.mrf.mxu0
    %v266 = vadd.f32 0.0, %v265
    %v267 = vpop.f32.mrf.mxu0
    %268 = vdwg.mxu0
    %269 = vmatpush.bf16.msra.mxu0 0
    %270 = vmatpush.bf16.msra.mxu0 0
    %271 = vmatpush.bf16.msra.mxu0 0
    %272 = vmatpush.bf16.msra.mxu0 0
    %273 = vmatpush.bf16.msra.mxu0 %v227
    %274 = vmatpush.bf16.msra.mxu0 %v225
    %275 = vmatpush.bf16.msra.mxu0 %v223
    %276 = vmatpush.bf16.msra.mxu0 %v221
    %277 = vmatmul.bf16.gmra.mxu0 %v238
    %v278 = vpop.f32.mrf.mxu0
    %v279 = vadd.f32 0.0, %v278
    %v280 = vpop.f32.mrf.mxu0
    %v281 = vadd.f32 0.0, %v280
    %282 = vmatmul.bf16.gmra.mxu0 %v241
    %v283 = vpop.f32.mrf.mxu0
    %v284 = vadd.f32 0.0, %v283
    %v285 = vpop.f32.mrf.mxu0
    %v286 = vadd.f32 0.0, %v285
    %287 = vmatmul.bf16.gmra.mxu0 %v244
    %v288 = vpop.f32.mrf.mxu0
    %v289 = vadd.f32 0.0, %v288
    %v290 = vpop.f32.mrf.mxu0
    %291 = vdwg.mxu0
    %v300 = vunpack.c.l.b16 %v179
    %v301 = vunpack.c.h.b16 %v179
    %v302 = vunpack.c.l.b16 %v180
    %v303 = vunpack.c.h.b16 %v180
    %v304 = vunpack.c.l.b16 %v181
    %v305 = vunpack.c.h.b16 %v181
    %v306 = vunpack.c.l.b16 %v182
    %v307 = vunpack.c.h.b16 %v182
    %v308 = vunpack.c.l.b16 %v183
    %v309 = vunpack.c.h.b16 %v183
    %v310 = vunpack.c.l.b16 %v184
    %v311 = vunpack.c.h.b16 %v184
    %v312 = vunpack.c.l.b16 %v185
    %v313 = vunpack.c.h.b16 %v185
    %v314 = vunpack.c.l.b16 %v186
    %v315 = vunpack.c.h.b16 %v186
    %v316 = vpack.c.b16 %v302, %v300
    %v317 = vpack.c.b16 %v303, %v301
    %v318 = vpack.c.b16 %v306, %v304
    %v319 = vpack.c.b16 %v307, %v305
    %v320 = vpack.c.b16 %v310, %v308
    %v321 = vpack.c.b16 %v311, %v309
    %v322 = vpack.c.b16 %v314, %v312
    %v323 = vpack.c.b16 %v315, %v313
    %v333 = vsel %vm236, %v162, 0
    %v336 = vsel %vm236, %v163, 0
    %v339 = vsel %vm236, %v164, 0
    %341 = vmatpush.bf16.msra.mxu0 0
    %342 = vmatpush.bf16.msra.mxu0 0
    %343 = vmatpush.bf16.msra.mxu0 0
    %344 = vmatpush.bf16.msra.mxu0 0
    %345 = vmatpush.bf16.msra.mxu0 %v322
    %346 = vmatpush.bf16.msra.mxu0 %v320
    %347 = vmatpush.bf16.msra.mxu0 %v318
    %348 = vmatpush.bf16.msra.mxu0 %v316
    %349 = vmatmul.bf16.gmra.mxu0 %v333
    %v350 = vpop.f32.mrf.mxu0
    %v351 = vadd.f32 %v256, %v350
    %v352 = vpop.f32.mrf.mxu0
    %v353 = vadd.f32 %v258, %v352
    %354 = vmatmul.bf16.gmra.mxu0 %v336
    %v355 = vpop.f32.mrf.mxu0
    %v356 = vadd.f32 %v261, %v355
    %v357 = vpop.f32.mrf.mxu0
    %v358 = vadd.f32 %v263, %v357
    %359 = vmatmul.bf16.gmra.mxu0 %v339
    %v360 = vpop.f32.mrf.mxu0
    %v361 = vadd.f32 %v266, %v360
    %v362 = vpop.f32.mrf.mxu0
    %363 = vdwg.mxu0
    %364 = vmatpush.bf16.msra.mxu0 0
    %365 = vmatpush.bf16.msra.mxu0 0
    %366 = vmatpush.bf16.msra.mxu0 0
    %367 = vmatpush.bf16.msra.mxu0 0
    %368 = vmatpush.bf16.msra.mxu0 %v323
    %369 = vmatpush.bf16.msra.mxu0 %v321
    %370 = vmatpush.bf16.msra.mxu0 %v319
    %371 = vmatpush.bf16.msra.mxu0 %v317
    %372 = vmatmul.bf16.gmra.mxu0 %v333
    %v373 = vpop.f32.mrf.mxu0
    %v374 = vadd.f32 %v279, %v373
    %v375 = vpop.f32.mrf.mxu0
    %v376 = vadd.f32 %v281, %v375
    %377 = vmatmul.bf16.gmra.mxu0 %v336
    %v378 = vpop.f32.mrf.mxu0
    %v379 = vadd.f32 %v284, %v378
    %v380 = vpop.f32.mrf.mxu0
    %v381 = vadd.f32 %v286, %v380
    %382 = vmatmul.bf16.gmra.mxu0 %v339
    %v383 = vpop.f32.mrf.mxu0
    %v384 = vadd.f32 %v289, %v383
    %v385 = vpop.f32.mrf.mxu0
    %386 = vdwg.mxu0
    %s387 = scalar_lea.vmem [#allocation2], 128
    %v388 = vld [vmem:[%s387] sm:$0xff]
    %v389 = vld [vmem:[%s387 + $0x8] sm:$0xff]
    %v390 = vld [vmem:[%s387 + $0x10] sm:$0xff]
    %v391 = vld [vmem:[%s387 + $0x18] sm:$0xff]
    %v392 = vld [vmem:[%s387 + $0x20] sm:$0xff]
    %v393 = vld [vmem:[%s387 + $0x28] sm:$0xff]
    %v394 = vld [vmem:[%s387 + $0x30] sm:$0xff]
    %v395 = vld [vmem:[%s387 + $0x38] sm:$0xff]
    %v404 = vunpack.c.l.b16 %v388
    %v405 = vunpack.c.h.b16 %v388
    %v406 = vunpack.c.l.b16 %v389
    %v407 = vunpack.c.h.b16 %v389
    %v408 = vunpack.c.l.b16 %v390
    %v409 = vunpack.c.h.b16 %v390
    %v410 = vunpack.c.l.b16 %v391
    %v411 = vunpack.c.h.b16 %v391
    %v412 = vunpack.c.l.b16 %v392
    %v413 = vunpack.c.h.b16 %v392
    %v414 = vunpack.c.l.b16 %v393
    %v415 = vunpack.c.h.b16 %v393
    %v416 = vunpack.c.l.b16 %v394
    %v417 = vunpack.c.h.b16 %v394
    %v418 = vunpack.c.l.b16 %v395
    %v419 = vunpack.c.h.b16 %v395
    %v420 = vpack.c.b16 %v406, %v404
    %v421 = vpack.c.b16 %v407, %v405
    %v422 = vpack.c.b16 %v410, %v408
    %v423 = vpack.c.b16 %v411, %v409
    %v424 = vpack.c.b16 %v414, %v412
    %v425 = vpack.c.b16 %v415, %v413
    %v426 = vpack.c.b16 %v418, %v416
    %v427 = vpack.c.b16 %v419, %v417
    %v437 = vsel %vm236, %v176, 0
    %v440 = vsel %vm236, %v177, 0
    %v443 = vsel %vm236, %v178, 0
    %445 = vmatpush.bf16.msra.mxu0 0
    %446 = vmatpush.bf16.msra.mxu0 0
    %447 = vmatpush.bf16.msra.mxu0 0
    %448 = vmatpush.bf16.msra.mxu0 0
    %449 = vmatpush.bf16.msra.mxu0 %v426
    %450 = vmatpush.bf16.msra.mxu0 %v424
    %451 = vmatpush.bf16.msra.mxu0 %v422
    %452 = vmatpush.bf16.msra.mxu0 %v420
    %453 = vmatmul.bf16.gmra.mxu0 %v437
    %v454 = vpop.f32.mrf.mxu0
    %v455 = vadd.f32 0.0, %v454
    %v456 = vpop.f32.mrf.mxu0
    %v457 = vadd.f32 0.0, %v456
    %458 = vmatmul.bf16.gmra.mxu0 %v440
    %v459 = vpop.f32.mrf.mxu0
    %v460 = vadd.f32 0.0, %v459
    %v461 = vpop.f32.mrf.mxu0
    %v462 = vadd.f32 0.0, %v461
    %463 = vmatmul.bf16.gmra.mxu0 %v443
    %v464 = vpop.f32.mrf.mxu0
    %v465 = vadd.f32 0.0, %v464
    %v466 = vpop.f32.mrf.mxu0
    %467 = vdwg.mxu0
    %468 = vmatpush.bf16.msra.mxu0 0
    %469 = vmatpush.bf16.msra.mxu0 0
    %470 = vmatpush.bf16.msra.mxu0 0
    %471 = vmatpush.bf16.msra.mxu0 0
    %472 = vmatpush.bf16.msra.mxu0 %v427
    %473 = vmatpush.bf16.msra.mxu0 %v425
    %474 = vmatpush.bf16.msra.mxu0 %v423
    %475 = vmatpush.bf16.msra.mxu0 %v421
    %476 = vmatmul.bf16.gmra.mxu0 %v437
    %v477 = vpop.f32.mrf.mxu0
    %v478 = vadd.f32 0.0, %v477
    %v479 = vpop.f32.mrf.mxu0
    %v480 = vadd.f32 0.0, %v479
    %481 = vmatmul.bf16.gmra.mxu0 %v440
    %v482 = vpop.f32.mrf.mxu0
    %v483 = vadd.f32 0.0, %v482
    %v484 = vpop.f32.mrf.mxu0
    %v485 = vadd.f32 0.0, %v484
    %486 = vmatmul.bf16.gmra.mxu0 %v443
    %v487 = vpop.f32.mrf.mxu0
    %v488 = vadd.f32 0.0, %v487
    %v489 = vpop.f32.mrf.mxu0
    %490 = vdwg.mxu0
    %v491 = vadd.f32 %v351, %v455
    %v492 = vadd.f32 %v374, %v478
    %v493 = vadd.f32 %v353, %v457
    %v494 = vadd.f32 %v376, %v480
    %v495 = vadd.f32 %v356, %v460
    %v496 = vadd.f32 %v379, %v483
    %v497 = vadd.f32 %v358, %v462
    %v498 = vadd.f32 %v381, %v485
    %v499 = vadd.f32 %v361, %v465
    %v500 = vadd.f32 %v384, %v488
    %v501 = vperm.slane %v62, 0
    %v502 = vperm.slane %v63, 0
    %v503 = vadd.f32 %v491, %v501
    %v504 = vadd.f32 %v492, %v502
    %v505 = vadd.f32 %v493, %v501
    %v506 = vadd.f32 %v494, %v502
    %v507 = vadd.f32 %v495, %v501
    %v508 = vadd.f32 %v496, %v502
    %v509 = vadd.f32 %v497, %v501
    %v510 = vadd.f32 %v498, %v502
    %v511 = vadd.f32 %v499, %v501
    %v512 = vadd.f32 %v500, %v502
    %vm513 = vcmask 326656
    %v515 = vsel %vm513, %v115, 0
    %517 = vmatpush.msra.mxu0 0.0
    %518 = vmatpush.msra.mxu0 0.0
    %519 = vmatpush.msra.mxu0 0.0
    %520 = vmatpush.msra.mxu0 0.0
    %521 = vmatpush.msra.mxu0 0.0
    %522 = vmatpush.msra.mxu0 0.0
    %523 = vmatpush.msra.mxu0 0.0
    %524 = vmatpush.msra.mxu0 0.0
    %525 = vmatpush.msra.mxu0 0.0
    %526 = vmatpush.msra.mxu0 0.0
    %527 = vmatpush.msra.mxu0 0.0
    %528 = vmatpush.msra.mxu0 %v511
    %529 = vmatpush.msra.mxu0 %v509
    %530 = vmatpush.msra.mxu0 %v507
    %531 = vmatpush.msra.mxu0 %v505
    %532 = vmatpush.msra.mxu0 %v503
    %533 = vmatmul.f32.gmra.mxu0 %v515
    %v534 = vpop.f32.mrf.mxu0
    %v535 = vadd.f32 0.0, %v534
    %536 = vdwg.mxu0
    %537 = vmatpush.msra.mxu0 0.0
    %538 = vmatpush.msra.mxu0 0.0
    %539 = vmatpush.msra.mxu0 0.0
    %540 = vmatpush.msra.mxu0 0.0
    %541 = vmatpush.msra.mxu0 0.0
    %542 = vmatpush.msra.mxu0 0.0
    %543 = vmatpush.msra.mxu0 0.0
    %544 = vmatpush.msra.mxu0 0.0
    %545 = vmatpush.msra.mxu0 0.0
    %546 = vmatpush.msra.mxu0 0.0
    %547 = vmatpush.msra.mxu0 0.0
    %548 = vmatpush.msra.mxu0 %v512
    %549 = vmatpush.msra.mxu0 %v510
    %550 = vmatpush.msra.mxu0 %v508
    %551 = vmatpush.msra.mxu0 %v506
    %552 = vmatpush.msra.mxu0 %v504
    %553 = vmatmul.f32.gmra.mxu0 %v515
    %v554 = vpop.f32.mrf.mxu0
    %v555 = vadd.f32 0.0, %v554
    %556 = vdwg.mxu0
    %v557 = vmul.f32 %v503, %v503
    %v558 = vmul.f32 %v504, %v504
    %v559 = vmul.f32 %v505, %v505
    %v560 = vmul.f32 %v506, %v506
    %v561 = vmul.f32 %v507, %v507
    %v562 = vmul.f32 %v508, %v508
    %v563 = vmul.f32 %v509, %v509
    %v564 = vmul.f32 %v510, %v510
    %v565 = vmul.f32 %v511, %v511
    %v566 = vmul.f32 %v512, %v512
    %567 = vmatpush.msra.mxu0 0.0
    %568 = vmatpush.msra.mxu0 0.0
    %569 = vmatpush.msra.mxu0 0.0
    %570 = vmatpush.msra.mxu0 0.0
    %571 = vmatpush.msra.mxu0 0.0
    %572 = vmatpush.msra.mxu0 0.0
    %573 = vmatpush.msra.mxu0 0.0
    %574 = vmatpush.msra.mxu0 0.0
    %575 = vmatpush.msra.mxu0 0.0
    %576 = vmatpush.msra.mxu0 0.0
    %577 = vmatpush.msra.mxu0 0.0
    %578 = vmatpush.msra.mxu0 %v565
    %579 = vmatpush.msra.mxu0 %v563
    %580 = vmatpush.msra.mxu0 %v561
    %581 = vmatpush.msra.mxu0 %v559
    %582 = vmatpush.msra.mxu0 %v557
    %583 = vmatmul.f32.gmra.mxu0 %v515
    %v584 = vpop.f32.mrf.mxu0
    %v585 = vadd.f32 0.0, %v584
    %586 = vdwg.mxu0
    %587 = vmatpush.msra.mxu0 0.0
    %588 = vmatpush.msra.mxu0 0.0
    %589 = vmatpush.msra.mxu0 0.0
    %590 = vmatpush.msra.mxu0 0.0
    %591 = vmatpush.msra.mxu0 0.0
    %592 = vmatpush.msra.mxu0 0.0
    %593 = vmatpush.msra.mxu0 0.0
    %594 = vmatpush.msra.mxu0 0.0
    %595 = vmatpush.msra.mxu0 0.0
    %596 = vmatpush.msra.mxu0 0.0
    %597 = vmatpush.msra.mxu0 0.0
    %598 = vmatpush.msra.mxu0 %v566
    %599 = vmatpush.msra.mxu0 %v564
    %600 = vmatpush.msra.mxu0 %v562
    %601 = vmatpush.msra.mxu0 %v560
    %602 = vmatpush.msra.mxu0 %v558
    %603 = vmatmul.f32.gmra.mxu0 %v515
    %v604 = vpop.f32.mrf.mxu0
    %v605 = vadd.f32 0.0, %v604
    %606 = vdwg.mxu0
    %607 = vmatpush.msra.mxu0 %v79
    %608 = vmatpush.msra.mxu0 %v78
    %609 = vmatpush.msra.mxu0 %v77
    %610 = vmatpush.msra.mxu0 %v76
    %611 = vmatpush.msra.mxu0 %v75
    %612 = vmatpush.msra.mxu0 %v74
    %613 = vmatpush.msra.mxu0 %v73
    %614 = vmatpush.msra.mxu0 %v72
    %615 = vmatpush.msra.mxu0 %v71
    %616 = vmatpush.msra.mxu0 %v70
    %617 = vmatpush.msra.mxu0 %v69
    %618 = vmatpush.msra.mxu0 %v68
    %619 = vmatpush.msra.mxu0 %v67
    %620 = vmatpush.msra.mxu0 %v66
    %621 = vmatpush.msra.mxu0 %v65
    %622 = vmatpush.msra.mxu0 %v64
    %623 = vmatmul.f32.gmra.mxu0 %v535
    %v624 = vpop.f32.mrf.mxu0
    %v625 = vadd.f32 0.0, %v624
    %626 = vdwg.mxu0
    %627 = vmatpush.msra.mxu0 %v95
    %628 = vmatpush.msra.mxu0 %v94
    %629 = vmatpush.msra.mxu0 %v93
    %630 = vmatpush.msra.mxu0 %v92
    %631 = vmatpush.msra.mxu0 %v91
    %632 = vmatpush.msra.mxu0 %v90
    %633 = vmatpush.msra.mxu0 %v89
    %634 = vmatpush.msra.mxu0 %v88
    %635 = vmatpush.msra.mxu0 %v87
    %636 = vmatpush.msra.mxu0 %v86
    %637 = vmatpush.msra.mxu0 %v85
    %638 = vmatpush.msra.mxu0 %v84
    %639 = vmatpush.msra.mxu0 %v83
    %640 = vmatpush.msra.mxu0 %v82
    %641 = vmatpush.msra.mxu0 %v81
    %642 = vmatpush.msra.mxu0 %v80
    %643 = vmatmul.f32.gmra.mxu0 %v555
    %v644 = vpop.f32.mrf.mxu0
    %v645 = vadd.f32 %v625, %v644
    %646 = vdwg.mxu0
    %647 = vmatpush.msra.mxu0 %v79
    %648 = vmatpush.msra.mxu0 %v78
    %649 = vmatpush.msra.mxu0 %v77
    %650 = vmatpush.msra.mxu0 %v76
    %651 = vmatpush.msra.mxu0 %v75
    %652 = vmatpush.msra.mxu0 %v74
    %653 = vmatpush.msra.mxu0 %v73
    %654 = vmatpush.msra.mxu0 %v72
    %655 = vmatpush.msra.mxu0 %v71
    %656 = vmatpush.msra.mxu0 %v70
    %657 = vmatpush.msra.mxu0 %v69
    %658 = vmatpush.msra.mxu0 %v68
    %659 = vmatpush.msra.mxu0 %v67
    %660 = vmatpush.msra.mxu0 %v66
    %661 = vmatpush.msra.mxu0 %v65
    %662 = vmatpush.msra.mxu0 %v64
    %663 = vmatmul.f32.gmra.mxu0 %v585
    %v664 = vpop.f32.mrf.mxu0
    %v665 = vadd.f32 0.0, %v664
    %666 = vdwg.mxu0
    %667 = vmatpush.msra.mxu0 %v95
    %668 = vmatpush.msra.mxu0 %v94
    %669 = vmatpush.msra.mxu0 %v93
    %670 = vmatpush.msra.mxu0 %v92
    %671 = vmatpush.msra.mxu0 %v91
    %672 = vmatpush.msra.mxu0 %v90
    %673 = vmatpush.msra.mxu0 %v89
    %674 = vmatpush.msra.mxu0 %v88
    %675 = vmatpush.msra.mxu0 %v87
    %676 = vmatpush.msra.mxu0 %v86
    %677 = vmatpush.msra.mxu0 %v85
    %678 = vmatpush.msra.mxu0 %v84
    %679 = vmatpush.msra.mxu0 %v83
    %680 = vmatpush.msra.mxu0 %v82
    %681 = vmatpush.msra.mxu0 %v81
    %682 = vmatpush.msra.mxu0 %v80
    %683 = vmatmul.f32.gmra.mxu0 %v605
    %v684 = vpop.f32.mrf.mxu0
    %v685 = vadd.f32 %v665, %v684
    %686 = vdwg.mxu0
    %v687 = vmul.f32 %v645, 0.0078125
    %v688 = vmul.f32 %v685, 0.0078125
    %v689 = vmul.f32 %v687, %v687
    %v690 = vsub.f32 %v688, %v689
    %v691 = vmax.f32 %v690, 0.0
    %v692 = vadd.f32 %v691, 1e-05
    %v693 = vrsqrt.pop %v692
    %v694 = vmul.f32 %v693, %v692
    %v695 = vmul.f32 %v694, %v693
    %v696 = vmul.f32 0.5, %v695
    %v697 = vsub.f32 1.5, %v696
    %v698 = vmul.f32 %v693, %v697
    %vm699 = vweird.f32 %v692
    %vm700 = vweird.f32 %v693
    %vm701 = vmor %vm699, %vm700
    %v702 = vsel %vm701, %v693, %v698
    %vm703 = vcmask 261120
    %v705 = vsel %vm703, %v687, 0
    %707 = vmatpush.msra.mxu0 0.0
    %708 = vmatpush.msra.mxu0 0.0
    %709 = vmatpush.msra.mxu0 0.0
    %710 = vmatpush.msra.mxu0 0.0
    %711 = vmatpush.msra.mxu0 0.0
    %712 = vmatpush.msra.mxu0 0.0
    %713 = vmatpush.msra.mxu0 0.0
    %714 = vmatpush.msra.mxu0 0.0
    %715 = vmatpush.msra.mxu0 0.0
    %716 = vmatpush.msra.mxu0 0.0
    %717 = vmatpush.msra.mxu0 0.0
    %718 = vmatpush.msra.mxu0 0.0
    %719 = vmatpush.msra.mxu0 %v102
    %720 = vmatpush.msra.mxu0 %v100
    %721 = vmatpush.msra.mxu0 %v98
    %722 = vmatpush.msra.mxu0 %v96
    %723 = vmatmul.f32.gmra.mxu0 %v705
    %v724 = vpop.f32.mrf.mxu0
    %v725 = vadd.f32 0.0, %v724
    %726 = vdwg.mxu0
    %727 = vmatpush.msra.mxu0 0.0
    %728 = vmatpush.msra.mxu0 0.0
    %729 = vmatpush.msra.mxu0 0.0
    %730 = vmatpush.msra.mxu0 0.0
    %731 = vmatpush.msra.mxu0 0.0
    %732 = vmatpush.msra.mxu0 0.0
    %733 = vmatpush.msra.mxu0 0.0
    %734 = vmatpush.msra.mxu0 0.0
    %735 = vmatpush.msra.mxu0 0.0
    %736 = vmatpush.msra.mxu0 0.0
    %737 = vmatpush.msra.mxu0 0.0
    %738 = vmatpush.msra.mxu0 0.0
    %739 = vmatpush.msra.mxu0 %v103
    %740 = vmatpush.msra.mxu0 %v101
    %741 = vmatpush.msra.mxu0 %v99
    %742 = vmatpush.msra.mxu0 %v97
    %743 = vmatmul.f32.gmra.mxu0 %v705
    %v744 = vpop.f32.mrf.mxu0
    %v745 = vadd.f32 0.0, %v744
    %746 = vdwg.mxu0
    %v748 = vsel %vm703, %v702, 0
    %750 = vmatpush.msra.mxu0 0.0
    %751 = vmatpush.msra.mxu0 0.0
    %752 = vmatpush.msra.mxu0 0.0
    %753 = vmatpush.msra.mxu0 0.0
    %754 = vmatpush.msra.mxu0 0.0
    %755 = vmatpush.msra.mxu0 0.0
    %756 = vmatpush.msra.mxu0 0.0
    %757 = vmatpush.msra.mxu0 0.0
    %758 = vmatpush.msra.mxu0 0.0
    %759 = vmatpush.msra.mxu0 0.0
    %760 = vmatpush.msra.mxu0 0.0
    %761 = vmatpush.msra.mxu0 0.0
    %762 = vmatpush.msra.mxu0 %v102
    %763 = vmatpush.msra.mxu0 %v100
    %764 = vmatpush.msra.mxu0 %v98
    %765 = vmatpush.msra.mxu0 %v96
    %766 = vmatmul.f32.gmra.mxu0 %v748
    %v767 = vpop.f32.mrf.mxu0
    %v768 = vadd.f32 0.0, %v767
    %769 = vdwg.mxu0
    %770 = vmatpush.msra.mxu0 0.0
    %771 = vmatpush.msra.mxu0 0.0
    %772 = vmatpush.msra.mxu0 0.0
    %773 = vmatpush.msra.mxu0 0.0
    %774 = vmatpush.msra.mxu0 0.0
    %775 = vmatpush.msra.mxu0 0.0
    %776 = vmatpush.msra.mxu0 0.0
    %777 = vmatpush.msra.mxu0 0.0
    %778 = vmatpush.msra.mxu0 0.0
    %779 = vmatpush.msra.mxu0 0.0
    %780 = vmatpush.msra.mxu0 0.0
    %781 = vmatpush.msra.mxu0 0.0
    %782 = vmatpush.msra.mxu0 %v103
    %783 = vmatpush.msra.mxu0 %v101
    %784 = vmatpush.msra.mxu0 %v99
    %785 = vmatpush.msra.mxu0 %v97
    %786 = vmatmul.f32.gmra.mxu0 %v748
    %v787 = vpop.f32.mrf.mxu0
    %v788 = vadd.f32 0.0, %v787
    %789 = vdwg.mxu0
    %v790 = vperm.slane %v62, 1
    %v791 = vperm.slane %v63, 1
    %v792 = vmul.f32 %v768, %v790
    %v793 = vmul.f32 %v788, %v791
    %v794 = vmul.f32 %v725, %v792
    %v795 = vmul.f32 %v745, %v793
    %v796 = vperm.slane %v62, 2
    %v797 = vperm.slane %v63, 2
    %v798 = vsub.f32 %v796, %v794
    %v799 = vsub.f32 %v797, %v795
    %vm800 = vcmask 15360
    %v802 = vsel %vm800, %v143, 0
    %v805 = vsel %vm800, %v144, 0
    %v808 = vsel %vm800, %v145, 0
    %v811 = vsel %vm800, %v146, 0
    %v814 = vsel %vm800, %v147, 0
    %vm816 = vcmask 1041408
    %v818 = vsel %vm816, %v792, 0
    %v821 = vsel %vm816, %v793, 0
    %823 = vmatpush.msra.mxu0 0.0
    %824 = vmatpush.msra.mxu0 0.0
    %825 = vmatpush.msra.mxu0 0.0
    %826 = vmatpush.msra.mxu0 0.0
    %827 = vmatpush.msra.mxu0 0.0
    %828 = vmatpush.msra.mxu0 0.0
    %829 = vmatpush.msra.mxu0 0.0
    %830 = vmatpush.msra.mxu0 0.0
    %831 = vmatpush.msra.mxu0 0.0
    %832 = vmatpush.msra.mxu0 0.0
    %833 = vmatpush.msra.mxu0 0.0
    %834 = vmatpush.msra.mxu0 0.0
    %835 = vmatpush.msra.mxu0 0.0
    %836 = vmatpush.msra.mxu0 0.0
    %837 = vmatpush.msra.mxu0 0.0
    %838 = vmatpush.msra.mxu0 %v818
    %839 = vmatmul.f32.gmra.mxu0 %v802
    %v840 = vpop.f32.mrf.mxu0
    %v841 = vadd.f32 0.0, %v840
    %842 = vmatmul.f32.gmra.mxu0 %v805
    %v843 = vpop.f32.mrf.mxu0
    %v844 = vadd.f32 0.0, %v843
    %845 = vmatmul.f32.gmra.mxu0 %v808
    %v846 = vpop.f32.mrf.mxu0
    %v847 = vadd.f32 0.0, %v846
    %848 = vmatmul.f32.gmra.mxu0 %v811
    %v849 = vpop.f32.mrf.mxu0
    %v850 = vadd.f32 0.0, %v849
    %851 = vmatmul.f32.gmra.mxu0 %v814
    %v852 = vpop.f32.mrf.mxu0
    %v853 = vadd.f32 0.0, %v852
    %854 = vdwg.mxu0
    %855 = vmatpush.msra.mxu0 0.0
    %856 = vmatpush.msra.mxu0 0.0
    %857 = vmatpush.msra.mxu0 0.0
    %858 = vmatpush.msra.mxu0 0.0
    %859 = vmatpush.msra.mxu0 0.0
    %860 = vmatpush.msra.mxu0 0.0
    %861 = vmatpush.msra.mxu0 0.0
    %862 = vmatpush.msra.mxu0 0.0
    %863 = vmatpush.msra.mxu0 0.0
    %864 = vmatpush.msra.mxu0 0.0
    %865 = vmatpush.msra.mxu0 0.0
    %866 = vmatpush.msra.mxu0 0.0
    %867 = vmatpush.msra.mxu0 0.0
    %868 = vmatpush.msra.mxu0 0.0
    %869 = vmatpush.msra.mxu0 0.0
    %870 = vmatpush.msra.mxu0 %v821
    %871 = vmatmul.f32.gmra.mxu0 %v802
    %v872 = vpop.f32.mrf.mxu0
    %v873 = vadd.f32 0.0, %v872
    %874 = vmatmul.f32.gmra.mxu0 %v805
    %v875 = vpop.f32.mrf.mxu0
    %v876 = vadd.f32 0.0, %v875
    %877 = vmatmul.f32.gmra.mxu0 %v808
    %v878 = vpop.f32.mrf.mxu0
    %v879 = vadd.f32 0.0, %v878
    %880 = vmatmul.f32.gmra.mxu0 %v811
    %v881 = vpop.f32.mrf.mxu0
    %v882 = vadd.f32 0.0, %v881
    %883 = vmatmul.f32.gmra.mxu0 %v814
    %v884 = vpop.f32.mrf.mxu0
    %v885 = vadd.f32 0.0, %v884
    %886 = vdwg.mxu0
    %v888 = vsel %vm816, %v798, 0
    %v891 = vsel %vm816, %v799, 0
    %893 = vmatpush.msra.mxu0 0.0
    %894 = vmatpush.msra.mxu0 0.0
    %895 = vmatpush.msra.mxu0 0.0
    %896 = vmatpush.msra.mxu0 0.0
    %897 = vmatpush.msra.mxu0 0.0
    %898 = vmatpush.msra.mxu0 0.0
    %899 = vmatpush.msra.mxu0 0.0
    %900 = vmatpush.msra.mxu0 0.0
    %901 = vmatpush.msra.mxu0 0.0
    %902 = vmatpush.msra.mxu0 0.0
    %903 = vmatpush.msra.mxu0 0.0
    %904 = vmatpush.msra.mxu0 0.0
    %905 = vmatpush.msra.mxu0 0.0
    %906 = vmatpush.msra.mxu0 0.0
    %907 = vmatpush.msra.mxu0 0.0
    %908 = vmatpush.msra.mxu0 %v888
    %909 = vmatmul.f32.gmra.mxu0 %v802
    %v910 = vpop.f32.mrf.mxu0
    %v911 = vadd.f32 0.0, %v910
    %912 = vmatmul.f32.gmra.mxu0 %v805
    %v913 = vpop.f32.mrf.mxu0
    %v914 = vadd.f32 0.0, %v913
    %915 = vmatmul.f32.gmra.mxu0 %v808
    %v916 = vpop.f32.mrf.mxu0
    %v917 = vadd.f32 0.0, %v916
    %918 = vmatmul.f32.gmra.mxu0 %v811
    %v919 = vpop.f32.mrf.mxu0
    %v920 = vadd.f32 0.0, %v919
    %921 = vmatmul.f32.gmra.mxu0 %v814
    %v922 = vpop.f32.mrf.mxu0
    %v923 = vadd.f32 0.0, %v922
    %924 = vdwg.mxu0
    %925 = vmatpush.msra.mxu0 0.0
    %926 = vmatpush.msra.mxu0 0.0
    %927 = vmatpush.msra.mxu0 0.0
    %928 = vmatpush.msra.mxu0 0.0
    %929 = vmatpush.msra.mxu0 0.0
    %930 = vmatpush.msra.mxu0 0.0
    %931 = vmatpush.msra.mxu0 0.0
    %932 = vmatpush.msra.mxu0 0.0
    %933 = vmatpush.msra.mxu0 0.0
    %934 = vmatpush.msra.mxu0 0.0
    %935 = vmatpush.msra.mxu0 0.0
    %936 = vmatpush.msra.mxu0 0.0
    %937 = vmatpush.msra.mxu0 0.0
    %938 = vmatpush.msra.mxu0 0.0
    %939 = vmatpush.msra.mxu0 0.0
    %940 = vmatpush.msra.mxu0 %v891
    %941 = vmatmul.f32.gmra.mxu0 %v802
    %v942 = vpop.f32.mrf.mxu0
    %v943 = vadd.f32 0.0, %v942
    %944 = vmatmul.f32.gmra.mxu0 %v805
    %v945 = vpop.f32.mrf.mxu0
    %v946 = vadd.f32 0.0, %v945
    %947 = vmatmul.f32.gmra.mxu0 %v808
    %v948 = vpop.f32.mrf.mxu0
    %v949 = vadd.f32 0.0, %v948
    %950 = vmatmul.f32.gmra.mxu0 %v811
    %v951 = vpop.f32.mrf.mxu0
    %v952 = vadd.f32 0.0, %v951
    %953 = vmatmul.f32.gmra.mxu0 %v814
    %v954 = vpop.f32.mrf.mxu0
    %v955 = vadd.f32 0.0, %v954
    %956 = vdwg.mxu0
    %v957 = vmul.f32 %v503, %v841
    %v958 = vmul.f32 %v504, %v873
    %v959 = vmul.f32 %v505, %v844
    %v960 = vmul.f32 %v506, %v876
    %v961 = vmul.f32 %v507, %v847
    %v962 = vmul.f32 %v508, %v879
    %v963 = vmul.f32 %v509, %v850
    %v964 = vmul.f32 %v510, %v882
    %v965 = vmul.f32 %v511, %v853
    %v966 = vmul.f32 %v512, %v885
    %v967 = vadd.f32 %v957, %v911
    %v968 = vadd.f32 %v958, %v943
    %v969 = vadd.f32 %v959, %v914
    %v970 = vadd.f32 %v960, %v946
    %v971 = vadd.f32 %v961, %v917
    %v972 = vadd.f32 %v962, %v949
    %v973 = vadd.f32 %v963, %v920
    %v974 = vadd.f32 %v964, %v952
    %v975 = vadd.f32 %v965, %v923
    %v976 = vadd.f32 %v966, %v955
    %v977 = vmax.f32 %v967, 0.0
    %v978 = vmax.f32 %v968, 0.0
    %v979 = vmax.f32 %v969, 0.0
    %v980 = vmax.f32 %v970, 0.0
    %v981 = vmax.f32 %v971, 0.0
    %v982 = vmax.f32 %v972, 0.0
    %v983 = vmax.f32 %v973, 0.0
    %v984 = vmax.f32 %v974, 0.0
    %v985 = vmax.f32 %v975, 0.0
    %v986 = vmax.f32 %v976, 0.0
    %v987 = vpack.c.bf16 %v979, %v977
    %v988 = vpack.c.bf16 %v980, %v978
    %v989 = vpack.c.bf16 %v983, %v981
    %v990 = vpack.c.bf16 %v984, %v982
    %v991 = vpack.c.bf16 %v985, %v985
    %v992 = vpack.c.bf16 %v986, %v986
    %v993 = vrot.slane %v977, 7
    %v994 = vrot.slane %v978, 7
    %v995 = vrot.slane %v979, 7
    %v996 = vrot.slane %v980, 7
    %v997 = vrot.slane %v981, 7
    %v998 = vrot.slane %v982, 7
    %v999 = vrot.slane %v983, 7
    %v1000 = vrot.slane %v984, 7
    %v1001 = vrot.slane %v985, 7
    %v1002 = vrot.slane %v986, 7
    %v1003 = vsel %vm156, %v999, %v1001
    %v1004 = vsel %vm156, %v1000, %v1002
    %v1005 = vsel %vm156, %v997, %v999
    %v1006 = vsel %vm156, %v998, %v1000
    %v1007 = vsel %vm156, %v995, %v997
    %v1008 = vsel %vm156, %v996, %v998
    %v1009 = vsel %vm156, %v993, %v995
    %v1010 = vsel %vm156, %v994, %v996
    %v1011 = vsel %vm156, %v1001, %v993
    %v1012 = vsel %vm156, %v1002, %v994
    %v1013 = vpack.c.bf16 %v1009, %v1011
    %v1014 = vpack.c.bf16 %v1010, %v1012
    %v1015 = vpack.c.bf16 %v1005, %v1007
    %v1016 = vpack.c.bf16 %v1006, %v1008
    %v1017 = vpack.c.bf16 %v1003, %v1003
    %v1018 = vpack.c.bf16 %v1004, %v1004
    %v1019 = vrot.slane %v977, 1
    %v1020 = vrot.slane %v978, 1
    %v1021 = vrot.slane %v979, 1
    %v1022 = vrot.slane %v980, 1
    %v1023 = vrot.slane %v981, 1
    %v1024 = vrot.slane %v982, 1
    %v1025 = vrot.slane %v983, 1
    %v1026 = vrot.slane %v984, 1
    %v1027 = vrot.slane %v985, 1
    %v1028 = vrot.slane %v986, 1
    %v1029 = vsel %vm170, %v1025, %v1027
    %v1030 = vsel %vm170, %v1026, %v1028
    %v1031 = vsel %vm170, %v1023, %v1025
    %v1032 = vsel %vm170, %v1024, %v1026
    %v1033 = vsel %vm170, %v1021, %v1023
    %v1034 = vsel %vm170, %v1022, %v1024
    %v1035 = vsel %vm170, %v1019, %v1021
    %v1036 = vsel %vm170, %v1020, %v1022
    %v1037 = vsel %vm170, %v1027, %v1019
    %v1038 = vsel %vm170, %v1028, %v1020
    %v1039 = vpack.c.bf16 %v1033, %v1035
    %v1040 = vpack.c.bf16 %v1034, %v1036
    %v1041 = vpack.c.bf16 %v1029, %v1031
    %v1042 = vpack.c.bf16 %v1030, %v1032
    %v1043 = vpack.c.bf16 %v1037, %v1037
    %v1044 = vpack.c.bf16 %v1038, %v1038
    %v1045 = vld [vmem:[%s2] sm:$0xff]
    %v1046 = vld [vmem:[%s2 + $0x8] sm:$0xff]
    %v1047 = vld [vmem:[%s2 + $0x10] sm:$0xff]
    %v1048 = vld [vmem:[%s2 + $0x18] sm:$0xff]
    %v1049 = vld [vmem:[%s2 + $0x20] sm:$0xff]
    %v1050 = vld [vmem:[%s2 + $0x28] sm:$0xff]
    %v1051 = vld [vmem:[%s2 + $0x30] sm:$0xff]
    %v1052 = vld [vmem:[%s2 + $0x38] sm:$0xff]
    %v1053 = vld [vmem:[%s2 + $0x40] sm:$0xff]
    %v1054 = vld [vmem:[%s2 + $0x48] sm:$0xff]
    %v1055 = vld [vmem:[%s2 + $0x50] sm:$0xff]
    %v1056 = vld [vmem:[%s2 + $0x58] sm:$0xff]
    %v1057 = vld [vmem:[%s2 + $0x60] sm:$0xff]
    %v1058 = vld [vmem:[%s2 + $0x68] sm:$0xff]
    %v1059 = vld [vmem:[%s2 + $0x70] sm:$0xff]
    %v1060 = vld [vmem:[%s2 + $0x78] sm:$0xff]
    %v1061 = vld [vmem:[%s2 + $0x80] sm:$0xff]
    %v1062 = vld [vmem:[%s2 + $0x88] sm:$0xff]
    %v1063 = vld [vmem:[%s2 + $0x90] sm:$0xff]
    %v1064 = vld [vmem:[%s2 + $0x98] sm:$0xff]
    %v1065 = vld [vmem:[%s2 + $0xa0] sm:$0xff]
    %v1066 = vld [vmem:[%s2 + $0xa8] sm:$0xff]
    %v1067 = vld [vmem:[%s2 + $0xb0] sm:$0xff]
    %v1068 = vld [vmem:[%s2 + $0xb8] sm:$0xff]
    %v1069 = vld [vmem:[%s2 + $0xc0] sm:$0xff]
    %v1070 = vld [vmem:[%s2 + $0xc8] sm:$0xff]
    %v1071 = vld [vmem:[%s2 + $0xd0] sm:$0xff]
    %v1072 = vld [vmem:[%s2 + $0xd8] sm:$0xff]
    %v1073 = vld [vmem:[%s2 + $0xe0] sm:$0xff]
    %v1074 = vld [vmem:[%s2 + $0xe8] sm:$0xff]
    %v1075 = vld [vmem:[%s2 + $0xf0] sm:$0xff]
    %v1076 = vld [vmem:[%s2 + $0xf8] sm:$0xff]
    %s1077 = scalar_lea.vmem %s2, 256
    %v1078 = vld [vmem:[%s1077] sm:$0xff]
    %v1079 = vld [vmem:[%s1077 + $0x8] sm:$0xff]
    %v1080 = vld [vmem:[%s1077 + $0x10] sm:$0xff]
    %v1081 = vld [vmem:[%s1077 + $0x18] sm:$0xff]
    %v1082 = vld [vmem:[%s1077 + $0x20] sm:$0xff]
    %v1083 = vld [vmem:[%s1077 + $0x28] sm:$0xff]
    %v1084 = vld [vmem:[%s1077 + $0x30] sm:$0xff]
    %v1085 = vld [vmem:[%s1077 + $0x38] sm:$0xff]
    %v1086 = vld [vmem:[%s1077 + $0x40] sm:$0xff]
    %v1087 = vld [vmem:[%s1077 + $0x48] sm:$0xff]
    %v1088 = vld [vmem:[%s1077 + $0x50] sm:$0xff]
    %v1089 = vld [vmem:[%s1077 + $0x58] sm:$0xff]
    %v1090 = vld [vmem:[%s1077 + $0x60] sm:$0xff]
    %v1091 = vld [vmem:[%s1077 + $0x68] sm:$0xff]
    %v1092 = vld [vmem:[%s1077 + $0x70] sm:$0xff]
    %v1093 = vld [vmem:[%s1077 + $0x78] sm:$0xff]
    %v1094 = vld [vmem:[%s1077 + $0x80] sm:$0xff]
    %v1095 = vld [vmem:[%s1077 + $0x88] sm:$0xff]
    %v1096 = vld [vmem:[%s1077 + $0x90] sm:$0xff]
    %v1097 = vld [vmem:[%s1077 + $0x98] sm:$0xff]
    %v1098 = vld [vmem:[%s1077 + $0xa0] sm:$0xff]
    %v1099 = vld [vmem:[%s1077 + $0xa8] sm:$0xff]
    %v1100 = vld [vmem:[%s1077 + $0xb0] sm:$0xff]
    %v1101 = vld [vmem:[%s1077 + $0xb8] sm:$0xff]
    %v1102 = vld [vmem:[%s1077 + $0xc0] sm:$0xff]
    %v1103 = vld [vmem:[%s1077 + $0xc8] sm:$0xff]
    %v1104 = vld [vmem:[%s1077 + $0xd0] sm:$0xff]
    %v1105 = vld [vmem:[%s1077 + $0xd8] sm:$0xff]
    %v1106 = vld [vmem:[%s1077 + $0xe0] sm:$0xff]
    %v1107 = vld [vmem:[%s1077 + $0xe8] sm:$0xff]
    %v1108 = vld [vmem:[%s1077 + $0xf0] sm:$0xff]
    %v1109 = vld [vmem:[%s1077 + $0xf8] sm:$0xff]
    %v1142 = vunpack.c.l.b16 %v1078
    %v1143 = vunpack.c.h.b16 %v1078
    %v1144 = vunpack.c.l.b16 %v1079
    %v1145 = vunpack.c.h.b16 %v1079
    %v1146 = vunpack.c.l.b16 %v1080
    %v1147 = vunpack.c.h.b16 %v1080
    %v1148 = vunpack.c.l.b16 %v1081
    %v1149 = vunpack.c.h.b16 %v1081
    %v1150 = vunpack.c.l.b16 %v1082
    %v1151 = vunpack.c.h.b16 %v1082
    %v1152 = vunpack.c.l.b16 %v1083
    %v1153 = vunpack.c.h.b16 %v1083
    %v1154 = vunpack.c.l.b16 %v1084
    %v1155 = vunpack.c.h.b16 %v1084
    %v1156 = vunpack.c.l.b16 %v1085
    %v1157 = vunpack.c.h.b16 %v1085
    %v1158 = vunpack.c.l.b16 %v1086
    %v1159 = vunpack.c.h.b16 %v1086
    %v1160 = vunpack.c.l.b16 %v1087
    %v1161 = vunpack.c.h.b16 %v1087
    %v1162 = vunpack.c.l.b16 %v1088
    %v1163 = vunpack.c.h.b16 %v1088
    %v1164 = vunpack.c.l.b16 %v1089
    %v1165 = vunpack.c.h.b16 %v1089
    %v1166 = vunpack.c.l.b16 %v1090
    %v1167 = vunpack.c.h.b16 %v1090
    %v1168 = vunpack.c.l.b16 %v1091
    %v1169 = vunpack.c.h.b16 %v1091
    %v1170 = vunpack.c.l.b16 %v1092
    %v1171 = vunpack.c.h.b16 %v1092
    %v1172 = vunpack.c.l.b16 %v1093
    %v1173 = vunpack.c.h.b16 %v1093
    %v1174 = vunpack.c.l.b16 %v1094
    %v1175 = vunpack.c.h.b16 %v1094
    %v1176 = vunpack.c.l.b16 %v1095
    %v1177 = vunpack.c.h.b16 %v1095
    %v1178 = vunpack.c.l.b16 %v1096
    %v1179 = vunpack.c.h.b16 %v1096
    %v1180 = vunpack.c.l.b16 %v1097
    %v1181 = vunpack.c.h.b16 %v1097
    %v1182 = vunpack.c.l.b16 %v1098
    %v1183 = vunpack.c.h.b16 %v1098
    %v1184 = vunpack.c.l.b16 %v1099
    %v1185 = vunpack.c.h.b16 %v1099
    %v1186 = vunpack.c.l.b16 %v1100
    %v1187 = vunpack.c.h.b16 %v1100
    %v1188 = vunpack.c.l.b16 %v1101
    %v1189 = vunpack.c.h.b16 %v1101
    %v1190 = vunpack.c.l.b16 %v1102
    %v1191 = vunpack.c.h.b16 %v1102
    %v1192 = vunpack.c.l.b16 %v1103
    %v1193 = vunpack.c.h.b16 %v1103
    %v1194 = vunpack.c.l.b16 %v1104
    %v1195 = vunpack.c.h.b16 %v1104
    %v1196 = vunpack.c.l.b16 %v1105
    %v1197 = vunpack.c.h.b16 %v1105
    %v1198 = vunpack.c.l.b16 %v1106
    %v1199 = vunpack.c.h.b16 %v1106
    %v1200 = vunpack.c.l.b16 %v1107
    %v1201 = vunpack.c.h.b16 %v1107
    %v1202 = vunpack.c.l.b16 %v1108
    %v1203 = vunpack.c.h.b16 %v1108
    %v1204 = vunpack.c.l.b16 %v1109
    %v1205 = vunpack.c.h.b16 %v1109
    %v1206 = vpack.c.b16 %v1144, %v1142
    %v1207 = vpack.c.b16 %v1145, %v1143
    %v1208 = vpack.c.b16 %v1148, %v1146
    %v1209 = vpack.c.b16 %v1149, %v1147
    %v1210 = vpack.c.b16 %v1152, %v1150
    %v1211 = vpack.c.b16 %v1153, %v1151
    %v1212 = vpack.c.b16 %v1156, %v1154
    %v1213 = vpack.c.b16 %v1157, %v1155
    %v1214 = vpack.c.b16 %v1160, %v1158
    %v1215 = vpack.c.b16 %v1161, %v1159
    %v1216 = vpack.c.b16 %v1164, %v1162
    %v1217 = vpack.c.b16 %v1165, %v1163
    %v1218 = vpack.c.b16 %v1168, %v1166
    %v1219 = vpack.c.b16 %v1169, %v1167
    %v1220 = vpack.c.b16 %v1172, %v1170
    %v1221 = vpack.c.b16 %v1173, %v1171
    %v1222 = vpack.c.b16 %v1176, %v1174
    %v1223 = vpack.c.b16 %v1177, %v1175
    %v1224 = vpack.c.b16 %v1180, %v1178
    %v1225 = vpack.c.b16 %v1181, %v1179
    %v1226 = vpack.c.b16 %v1184, %v1182
    %v1227 = vpack.c.b16 %v1185, %v1183
    %v1228 = vpack.c.b16 %v1188, %v1186
    %v1229 = vpack.c.b16 %v1189, %v1187
    %v1230 = vpack.c.b16 %v1192, %v1190
    %v1231 = vpack.c.b16 %v1193, %v1191
    %v1232 = vpack.c.b16 %v1196, %v1194
    %v1233 = vpack.c.b16 %v1197, %v1195
    %v1234 = vpack.c.b16 %v1200, %v1198
    %v1235 = vpack.c.b16 %v1201, %v1199
    %v1236 = vpack.c.b16 %v1204, %v1202
    %v1237 = vpack.c.b16 %v1205, %v1203
    %1270 = vmatpush.bf16.msra.mxu0 %v1220
    %1271 = vmatpush.bf16.msra.mxu0 %v1218
    %1272 = vmatpush.bf16.msra.mxu0 %v1216
    %1273 = vmatpush.bf16.msra.mxu0 %v1214
    %1274 = vmatpush.bf16.msra.mxu0 %v1212
    %1275 = vmatpush.bf16.msra.mxu0 %v1210
    %1276 = vmatpush.bf16.msra.mxu0 %v1208
    %1277 = vmatpush.bf16.msra.mxu0 %v1206
    %1278 = vmatmul.bf16.gmra.mxu0 %v987
    %v1279 = vpop.f32.mrf.mxu0
    %v1280 = vadd.f32 0.0, %v1279
    %v1281 = vpop.f32.mrf.mxu0
    %v1282 = vadd.f32 0.0, %v1281
    %1283 = vmatmul.bf16.gmra.mxu0 %v989
    %v1284 = vpop.f32.mrf.mxu0
    %v1285 = vadd.f32 0.0, %v1284
    %v1286 = vpop.f32.mrf.mxu0
    %v1287 = vadd.f32 0.0, %v1286
    %1288 = vmatmul.bf16.gmra.mxu0 %v991
    %v1289 = vpop.f32.mrf.mxu0
    %v1290 = vadd.f32 0.0, %v1289
    %v1291 = vpop.f32.mrf.mxu0
    %1292 = vdwg.mxu0
    %1293 = vmatpush.bf16.msra.mxu0 %v1236
    %1294 = vmatpush.bf16.msra.mxu0 %v1234
    %1295 = vmatpush.bf16.msra.mxu0 %v1232
    %1296 = vmatpush.bf16.msra.mxu0 %v1230
    %1297 = vmatpush.bf16.msra.mxu0 %v1228
    %1298 = vmatpush.bf16.msra.mxu0 %v1226
    %1299 = vmatpush.bf16.msra.mxu0 %v1224
    %1300 = vmatpush.bf16.msra.mxu0 %v1222
    %1301 = vmatmul.bf16.gmra.mxu0 %v988
    %v1302 = vpop.f32.mrf.mxu0
    %v1303 = vadd.f32 %v1280, %v1302
    %v1304 = vpop.f32.mrf.mxu0
    %v1305 = vadd.f32 %v1282, %v1304
    %1306 = vmatmul.bf16.gmra.mxu0 %v990
    %v1307 = vpop.f32.mrf.mxu0
    %v1308 = vadd.f32 %v1285, %v1307
    %v1309 = vpop.f32.mrf.mxu0
    %v1310 = vadd.f32 %v1287, %v1309
    %1311 = vmatmul.bf16.gmra.mxu0 %v992
    %v1312 = vpop.f32.mrf.mxu0
    %v1313 = vadd.f32 %v1290, %v1312
    %v1314 = vpop.f32.mrf.mxu0
    %1315 = vdwg.mxu0
    %1316 = vmatpush.bf16.msra.mxu0 %v1221
    %1317 = vmatpush.bf16.msra.mxu0 %v1219
    %1318 = vmatpush.bf16.msra.mxu0 %v1217
    %1319 = vmatpush.bf16.msra.mxu0 %v1215
    %1320 = vmatpush.bf16.msra.mxu0 %v1213
    %1321 = vmatpush.bf16.msra.mxu0 %v1211
    %1322 = vmatpush.bf16.msra.mxu0 %v1209
    %1323 = vmatpush.bf16.msra.mxu0 %v1207
    %1324 = vmatmul.bf16.gmra.mxu0 %v987
    %v1325 = vpop.f32.mrf.mxu0
    %v1326 = vadd.f32 0.0, %v1325
    %v1327 = vpop.f32.mrf.mxu0
    %v1328 = vadd.f32 0.0, %v1327
    %1329 = vmatmul.bf16.gmra.mxu0 %v989
    %v1330 = vpop.f32.mrf.mxu0
    %v1331 = vadd.f32 0.0, %v1330
    %v1332 = vpop.f32.mrf.mxu0
    %v1333 = vadd.f32 0.0, %v1332
    %1334 = vmatmul.bf16.gmra.mxu0 %v991
    %v1335 = vpop.f32.mrf.mxu0
    %v1336 = vadd.f32 0.0, %v1335
    %v1337 = vpop.f32.mrf.mxu0
    %1338 = vdwg.mxu0
    %1339 = vmatpush.bf16.msra.mxu0 %v1237
    %1340 = vmatpush.bf16.msra.mxu0 %v1235
    %1341 = vmatpush.bf16.msra.mxu0 %v1233
    %1342 = vmatpush.bf16.msra.mxu0 %v1231
    %1343 = vmatpush.bf16.msra.mxu0 %v1229
    %1344 = vmatpush.bf16.msra.mxu0 %v1227
    %1345 = vmatpush.bf16.msra.mxu0 %v1225
    %1346 = vmatpush.bf16.msra.mxu0 %v1223
    %1347 = vmatmul.bf16.gmra.mxu0 %v988
    %v1348 = vpop.f32.mrf.mxu0
    %v1349 = vadd.f32 %v1326, %v1348
    %v1350 = vpop.f32.mrf.mxu0
    %v1351 = vadd.f32 %v1328, %v1350
    %1352 = vmatmul.bf16.gmra.mxu0 %v990
    %v1353 = vpop.f32.mrf.mxu0
    %v1354 = vadd.f32 %v1331, %v1353
    %v1355 = vpop.f32.mrf.mxu0
    %v1356 = vadd.f32 %v1333, %v1355
    %1357 = vmatmul.bf16.gmra.mxu0 %v992
    %v1358 = vpop.f32.mrf.mxu0
    %v1359 = vadd.f32 %v1336, %v1358
    %v1360 = vpop.f32.mrf.mxu0
    %1361 = vdwg.mxu0
    %v1394 = vunpack.c.l.b16 %v1045
    %v1395 = vunpack.c.h.b16 %v1045
    %v1396 = vunpack.c.l.b16 %v1046
    %v1397 = vunpack.c.h.b16 %v1046
    %v1398 = vunpack.c.l.b16 %v1047
    %v1399 = vunpack.c.h.b16 %v1047
    %v1400 = vunpack.c.l.b16 %v1048
    %v1401 = vunpack.c.h.b16 %v1048
    %v1402 = vunpack.c.l.b16 %v1049
    %v1403 = vunpack.c.h.b16 %v1049
    %v1404 = vunpack.c.l.b16 %v1050
    %v1405 = vunpack.c.h.b16 %v1050
    %v1406 = vunpack.c.l.b16 %v1051
    %v1407 = vunpack.c.h.b16 %v1051
    %v1408 = vunpack.c.l.b16 %v1052
    %v1409 = vunpack.c.h.b16 %v1052
    %v1410 = vunpack.c.l.b16 %v1053
    %v1411 = vunpack.c.h.b16 %v1053
    %v1412 = vunpack.c.l.b16 %v1054
    %v1413 = vunpack.c.h.b16 %v1054
    %v1414 = vunpack.c.l.b16 %v1055
    %v1415 = vunpack.c.h.b16 %v1055
    %v1416 = vunpack.c.l.b16 %v1056
    %v1417 = vunpack.c.h.b16 %v1056
    %v1418 = vunpack.c.l.b16 %v1057
    %v1419 = vunpack.c.h.b16 %v1057
    %v1420 = vunpack.c.l.b16 %v1058
    %v1421 = vunpack.c.h.b16 %v1058
    %v1422 = vunpack.c.l.b16 %v1059
    %v1423 = vunpack.c.h.b16 %v1059
    %v1424 = vunpack.c.l.b16 %v1060
    %v1425 = vunpack.c.h.b16 %v1060
    %v1426 = vunpack.c.l.b16 %v1061
    %v1427 = vunpack.c.h.b16 %v1061
    %v1428 = vunpack.c.l.b16 %v1062
    %v1429 = vunpack.c.h.b16 %v1062
    %v1430 = vunpack.c.l.b16 %v1063
    %v1431 = vunpack.c.h.b16 %v1063
    %v1432 = vunpack.c.l.b16 %v1064
    %v1433 = vunpack.c.h.b16 %v1064
    %v1434 = vunpack.c.l.b16 %v1065
    %v1435 = vunpack.c.h.b16 %v1065
    %v1436 = vunpack.c.l.b16 %v1066
    %v1437 = vunpack.c.h.b16 %v1066
    %v1438 = vunpack.c.l.b16 %v1067
    %v1439 = vunpack.c.h.b16 %v1067
    %v1440 = vunpack.c.l.b16 %v1068
    %v1441 = vunpack.c.h.b16 %v1068
    %v1442 = vunpack.c.l.b16 %v1069
    %v1443 = vunpack.c.h.b16 %v1069
    %v1444 = vunpack.c.l.b16 %v1070
    %v1445 = vunpack.c.h.b16 %v1070
    %v1446 = vunpack.c.l.b16 %v1071
    %v1447 = vunpack.c.h.b16 %v1071
    %v1448 = vunpack.c.l.b16 %v1072
    %v1449 = vunpack.c.h.b16 %v1072
    %v1450 = vunpack.c.l.b16 %v1073
    %v1451 = vunpack.c.h.b16 %v1073
    %v1452 = vunpack.c.l.b16 %v1074
    %v1453 = vunpack.c.h.b16 %v1074
    %v1454 = vunpack.c.l.b16 %v1075
    %v1455 = vunpack.c.h.b16 %v1075
    %v1456 = vunpack.c.l.b16 %v1076
    %v1457 = vunpack.c.h.b16 %v1076
    %v1458 = vpack.c.b16 %v1396, %v1394
    %v1459 = vpack.c.b16 %v1397, %v1395
    %v1460 = vpack.c.b16 %v1400, %v1398
    %v1461 = vpack.c.b16 %v1401, %v1399
    %v1462 = vpack.c.b16 %v1404, %v1402
    %v1463 = vpack.c.b16 %v1405, %v1403
    %v1464 = vpack.c.b16 %v1408, %v1406
    %v1465 = vpack.c.b16 %v1409, %v1407
    %v1466 = vpack.c.b16 %v1412, %v1410
    %v1467 = vpack.c.b16 %v1413, %v1411
    %v1468 = vpack.c.b16 %v1416, %v1414
    %v1469 = vpack.c.b16 %v1417, %v1415
    %v1470 = vpack.c.b16 %v1420, %v1418
    %v1471 = vpack.c.b16 %v1421, %v1419
    %v1472 = vpack.c.b16 %v1424, %v1422
    %v1473 = vpack.c.b16 %v1425, %v1423
    %v1474 = vpack.c.b16 %v1428, %v1426
    %v1475 = vpack.c.b16 %v1429, %v1427
    %v1476 = vpack.c.b16 %v1432, %v1430
    %v1477 = vpack.c.b16 %v1433, %v1431
    %v1478 = vpack.c.b16 %v1436, %v1434
    %v1479 = vpack.c.b16 %v1437, %v1435
    %v1480 = vpack.c.b16 %v1440, %v1438
    %v1481 = vpack.c.b16 %v1441, %v1439
    %v1482 = vpack.c.b16 %v1444, %v1442
    %v1483 = vpack.c.b16 %v1445, %v1443
    %v1484 = vpack.c.b16 %v1448, %v1446
    %v1485 = vpack.c.b16 %v1449, %v1447
    %v1486 = vpack.c.b16 %v1452, %v1450
    %v1487 = vpack.c.b16 %v1453, %v1451
    %v1488 = vpack.c.b16 %v1456, %v1454
    %v1489 = vpack.c.b16 %v1457, %v1455
    %1522 = vmatpush.bf16.msra.mxu0 %v1472
    %1523 = vmatpush.bf16.msra.mxu0 %v1470
    %1524 = vmatpush.bf16.msra.mxu0 %v1468
    %1525 = vmatpush.bf16.msra.mxu0 %v1466
    %1526 = vmatpush.bf16.msra.mxu0 %v1464
    %1527 = vmatpush.bf16.msra.mxu0 %v1462
    %1528 = vmatpush.bf16.msra.mxu0 %v1460
    %1529 = vmatpush.bf16.msra.mxu0 %v1458
    %1530 = vmatmul.bf16.gmra.mxu0 %v1013
    %v1531 = vpop.f32.mrf.mxu0
    %v1532 = vadd.f32 %v1303, %v1531
    %v1533 = vpop.f32.mrf.mxu0
    %v1534 = vadd.f32 %v1305, %v1533
    %1535 = vmatmul.bf16.gmra.mxu0 %v1015
    %v1536 = vpop.f32.mrf.mxu0
    %v1537 = vadd.f32 %v1308, %v1536
    %v1538 = vpop.f32.mrf.mxu0
    %v1539 = vadd.f32 %v1310, %v1538
    %1540 = vmatmul.bf16.gmra.mxu0 %v1017
    %v1541 = vpop.f32.mrf.mxu0
    %v1542 = vadd.f32 %v1313, %v1541
    %v1543 = vpop.f32.mrf.mxu0
    %1544 = vdwg.mxu0
    %1545 = vmatpush.bf16.msra.mxu0 %v1488
    %1546 = vmatpush.bf16.msra.mxu0 %v1486
    %1547 = vmatpush.bf16.msra.mxu0 %v1484
    %1548 = vmatpush.bf16.msra.mxu0 %v1482
    %1549 = vmatpush.bf16.msra.mxu0 %v1480
    %1550 = vmatpush.bf16.msra.mxu0 %v1478
    %1551 = vmatpush.bf16.msra.mxu0 %v1476
    %1552 = vmatpush.bf16.msra.mxu0 %v1474
    %1553 = vmatmul.bf16.gmra.mxu0 %v1014
    %v1554 = vpop.f32.mrf.mxu0
    %v1555 = vadd.f32 %v1532, %v1554
    %v1556 = vpop.f32.mrf.mxu0
    %v1557 = vadd.f32 %v1534, %v1556
    %1558 = vmatmul.bf16.gmra.mxu0 %v1016
    %v1559 = vpop.f32.mrf.mxu0
    %v1560 = vadd.f32 %v1537, %v1559
    %v1561 = vpop.f32.mrf.mxu0
    %v1562 = vadd.f32 %v1539, %v1561
    %1563 = vmatmul.bf16.gmra.mxu0 %v1018
    %v1564 = vpop.f32.mrf.mxu0
    %v1565 = vadd.f32 %v1542, %v1564
    %v1566 = vpop.f32.mrf.mxu0
    %1567 = vdwg.mxu0
    %1568 = vmatpush.bf16.msra.mxu0 %v1473
    %1569 = vmatpush.bf16.msra.mxu0 %v1471
    %1570 = vmatpush.bf16.msra.mxu0 %v1469
    %1571 = vmatpush.bf16.msra.mxu0 %v1467
    %1572 = vmatpush.bf16.msra.mxu0 %v1465
    %1573 = vmatpush.bf16.msra.mxu0 %v1463
    %1574 = vmatpush.bf16.msra.mxu0 %v1461
    %1575 = vmatpush.bf16.msra.mxu0 %v1459
    %1576 = vmatmul.bf16.gmra.mxu0 %v1013
    %v1577 = vpop.f32.mrf.mxu0
    %v1578 = vadd.f32 %v1349, %v1577
    %v1579 = vpop.f32.mrf.mxu0
    %v1580 = vadd.f32 %v1351, %v1579
    %1581 = vmatmul.bf16.gmra.mxu0 %v1015
    %v1582 = vpop.f32.mrf.mxu0
    %v1583 = vadd.f32 %v1354, %v1582
    %v1584 = vpop.f32.mrf.mxu0
    %v1585 = vadd.f32 %v1356, %v1584
    %1586 = vmatmul.bf16.gmra.mxu0 %v1017
    %v1587 = vpop.f32.mrf.mxu0
    %v1588 = vadd.f32 %v1359, %v1587
    %v1589 = vpop.f32.mrf.mxu0
    %1590 = vdwg.mxu0
    %1591 = vmatpush.bf16.msra.mxu0 %v1489
    %1592 = vmatpush.bf16.msra.mxu0 %v1487
    %1593 = vmatpush.bf16.msra.mxu0 %v1485
    %1594 = vmatpush.bf16.msra.mxu0 %v1483
    %1595 = vmatpush.bf16.msra.mxu0 %v1481
    %1596 = vmatpush.bf16.msra.mxu0 %v1479
    %1597 = vmatpush.bf16.msra.mxu0 %v1477
    %1598 = vmatpush.bf16.msra.mxu0 %v1475
    %1599 = vmatmul.bf16.gmra.mxu0 %v1014
    %v1600 = vpop.f32.mrf.mxu0
    %v1601 = vadd.f32 %v1578, %v1600
    %v1602 = vpop.f32.mrf.mxu0
    %v1603 = vadd.f32 %v1580, %v1602
    %1604 = vmatmul.bf16.gmra.mxu0 %v1016
    %v1605 = vpop.f32.mrf.mxu0
    %v1606 = vadd.f32 %v1583, %v1605
    %v1607 = vpop.f32.mrf.mxu0
    %v1608 = vadd.f32 %v1585, %v1607
    %1609 = vmatmul.bf16.gmra.mxu0 %v1018
    %v1610 = vpop.f32.mrf.mxu0
    %v1611 = vadd.f32 %v1588, %v1610
    %v1612 = vpop.f32.mrf.mxu0
    %1613 = vdwg.mxu0
    %s1614 = scalar_lea.vmem %s2, 512
    %v1615 = vld [vmem:[%s1614] sm:$0xff]
    %v1616 = vld [vmem:[%s1614 + $0x8] sm:$0xff]
    %v1617 = vld [vmem:[%s1614 + $0x10] sm:$0xff]
    %v1618 = vld [vmem:[%s1614 + $0x18] sm:$0xff]
    %v1619 = vld [vmem:[%s1614 + $0x20] sm:$0xff]
    %v1620 = vld [vmem:[%s1614 + $0x28] sm:$0xff]
    %v1621 = vld [vmem:[%s1614 + $0x30] sm:$0xff]
    %v1622 = vld [vmem:[%s1614 + $0x38] sm:$0xff]
    %v1623 = vld [vmem:[%s1614 + $0x40] sm:$0xff]
    %v1624 = vld [vmem:[%s1614 + $0x48] sm:$0xff]
    %v1625 = vld [vmem:[%s1614 + $0x50] sm:$0xff]
    %v1626 = vld [vmem:[%s1614 + $0x58] sm:$0xff]
    %v1627 = vld [vmem:[%s1614 + $0x60] sm:$0xff]
    %v1628 = vld [vmem:[%s1614 + $0x68] sm:$0xff]
    %v1629 = vld [vmem:[%s1614 + $0x70] sm:$0xff]
    %v1630 = vld [vmem:[%s1614 + $0x78] sm:$0xff]
    %v1631 = vld [vmem:[%s1614 + $0x80] sm:$0xff]
    %v1632 = vld [vmem:[%s1614 + $0x88] sm:$0xff]
    %v1633 = vld [vmem:[%s1614 + $0x90] sm:$0xff]
    %v1634 = vld [vmem:[%s1614 + $0x98] sm:$0xff]
    %v1635 = vld [vmem:[%s1614 + $0xa0] sm:$0xff]
    %v1636 = vld [vmem:[%s1614 + $0xa8] sm:$0xff]
    %v1637 = vld [vmem:[%s1614 + $0xb0] sm:$0xff]
    %v1638 = vld [vmem:[%s1614 + $0xb8] sm:$0xff]
    %v1639 = vld [vmem:[%s1614 + $0xc0] sm:$0xff]
    %v1640 = vld [vmem:[%s1614 + $0xc8] sm:$0xff]
    %v1641 = vld [vmem:[%s1614 + $0xd0] sm:$0xff]
    %v1642 = vld [vmem:[%s1614 + $0xd8] sm:$0xff]
    %v1643 = vld [vmem:[%s1614 + $0xe0] sm:$0xff]
    %v1644 = vld [vmem:[%s1614 + $0xe8] sm:$0xff]
    %v1645 = vld [vmem:[%s1614 + $0xf0] sm:$0xff]
    %v1646 = vld [vmem:[%s1614 + $0xf8] sm:$0xff]
    %v1679 = vunpack.c.l.b16 %v1615
    %v1680 = vunpack.c.h.b16 %v1615
    %v1681 = vunpack.c.l.b16 %v1616
    %v1682 = vunpack.c.h.b16 %v1616
    %v1683 = vunpack.c.l.b16 %v1617
    %v1684 = vunpack.c.h.b16 %v1617
    %v1685 = vunpack.c.l.b16 %v1618
    %v1686 = vunpack.c.h.b16 %v1618
    %v1687 = vunpack.c.l.b16 %v1619
    %v1688 = vunpack.c.h.b16 %v1619
    %v1689 = vunpack.c.l.b16 %v1620
    %v1690 = vunpack.c.h.b16 %v1620
    %v1691 = vunpack.c.l.b16 %v1621
    %v1692 = vunpack.c.h.b16 %v1621
    %v1693 = vunpack.c.l.b16 %v1622
    %v1694 = vunpack.c.h.b16 %v1622
    %v1695 = vunpack.c.l.b16 %v1623
    %v1696 = vunpack.c.h.b16 %v1623
    %v1697 = vunpack.c.l.b16 %v1624
    %v1698 = vunpack.c.h.b16 %v1624
    %v1699 = vunpack.c.l.b16 %v1625
    %v1700 = vunpack.c.h.b16 %v1625
    %v1701 = vunpack.c.l.b16 %v1626
    %v1702 = vunpack.c.h.b16 %v1626
    %v1703 = vunpack.c.l.b16 %v1627
    %v1704 = vunpack.c.h.b16 %v1627
    %v1705 = vunpack.c.l.b16 %v1628
    %v1706 = vunpack.c.h.b16 %v1628
    %v1707 = vunpack.c.l.b16 %v1629
    %v1708 = vunpack.c.h.b16 %v1629
    %v1709 = vunpack.c.l.b16 %v1630
    %v1710 = vunpack.c.h.b16 %v1630
    %v1711 = vunpack.c.l.b16 %v1631
    %v1712 = vunpack.c.h.b16 %v1631
    %v1713 = vunpack.c.l.b16 %v1632
    %v1714 = vunpack.c.h.b16 %v1632
    %v1715 = vunpack.c.l.b16 %v1633
    %v1716 = vunpack.c.h.b16 %v1633
    %v1717 = vunpack.c.l.b16 %v1634
    %v1718 = vunpack.c.h.b16 %v1634
    %v1719 = vunpack.c.l.b16 %v1635
    %v1720 = vunpack.c.h.b16 %v1635
    %v1721 = vunpack.c.l.b16 %v1636
    %v1722 = vunpack.c.h.b16 %v1636
    %v1723 = vunpack.c.l.b16 %v1637
    %v1724 = vunpack.c.h.b16 %v1637
    %v1725 = vunpack.c.l.b16 %v1638
    %v1726 = vunpack.c.h.b16 %v1638
    %v1727 = vunpack.c.l.b16 %v1639
    %v1728 = vunpack.c.h.b16 %v1639
    %v1729 = vunpack.c.l.b16 %v1640
    %v1730 = vunpack.c.h.b16 %v1640
    %v1731 = vunpack.c.l.b16 %v1641
    %v1732 = vunpack.c.h.b16 %v1641
    %v1733 = vunpack.c.l.b16 %v1642
    %v1734 = vunpack.c.h.b16 %v1642
    %v1735 = vunpack.c.l.b16 %v1643
    %v1736 = vunpack.c.h.b16 %v1643
    %v1737 = vunpack.c.l.b16 %v1644
    %v1738 = vunpack.c.h.b16 %v1644
    %v1739 = vunpack.c.l.b16 %v1645
    %v1740 = vunpack.c.h.b16 %v1645
    %v1741 = vunpack.c.l.b16 %v1646
    %v1742 = vunpack.c.h.b16 %v1646
    %v1743 = vpack.c.b16 %v1681, %v1679
    %v1744 = vpack.c.b16 %v1682, %v1680
    %v1745 = vpack.c.b16 %v1685, %v1683
    %v1746 = vpack.c.b16 %v1686, %v1684
    %v1747 = vpack.c.b16 %v1689, %v1687
    %v1748 = vpack.c.b16 %v1690, %v1688
    %v1749 = vpack.c.b16 %v1693, %v1691
    %v1750 = vpack.c.b16 %v1694, %v1692
    %v1751 = vpack.c.b16 %v1697, %v1695
    %v1752 = vpack.c.b16 %v1698, %v1696
    %v1753 = vpack.c.b16 %v1701, %v1699
    %v1754 = vpack.c.b16 %v1702, %v1700
    %v1755 = vpack.c.b16 %v1705, %v1703
    %v1756 = vpack.c.b16 %v1706, %v1704
    %v1757 = vpack.c.b16 %v1709, %v1707
    %v1758 = vpack.c.b16 %v1710, %v1708
    %v1759 = vpack.c.b16 %v1713, %v1711
    %v1760 = vpack.c.b16 %v1714, %v1712
    %v1761 = vpack.c.b16 %v1717, %v1715
    %v1762 = vpack.c.b16 %v1718, %v1716
    %v1763 = vpack.c.b16 %v1721, %v1719
    %v1764 = vpack.c.b16 %v1722, %v1720
    %v1765 = vpack.c.b16 %v1725, %v1723
    %v1766 = vpack.c.b16 %v1726, %v1724
    %v1767 = vpack.c.b16 %v1729, %v1727
    %v1768 = vpack.c.b16 %v1730, %v1728
    %v1769 = vpack.c.b16 %v1733, %v1731
    %v1770 = vpack.c.b16 %v1734, %v1732
    %v1771 = vpack.c.b16 %v1737, %v1735
    %v1772 = vpack.c.b16 %v1738, %v1736
    %v1773 = vpack.c.b16 %v1741, %v1739
    %v1774 = vpack.c.b16 %v1742, %v1740
    %1807 = vmatpush.bf16.msra.mxu0 %v1757
    %1808 = vmatpush.bf16.msra.mxu0 %v1755
    %1809 = vmatpush.bf16.msra.mxu0 %v1753
    %1810 = vmatpush.bf16.msra.mxu0 %v1751
    %1811 = vmatpush.bf16.msra.mxu0 %v1749
    %1812 = vmatpush.bf16.msra.mxu0 %v1747
    %1813 = vmatpush.bf16.msra.mxu0 %v1745
    %1814 = vmatpush.bf16.msra.mxu0 %v1743
    %1815 = vmatmul.bf16.gmra.mxu0 %v1039
    %v1816 = vpop.f32.mrf.mxu0
    %v1817 = vadd.f32 0.0, %v1816
    %v1818 = vpop.f32.mrf.mxu0
    %v1819 = vadd.f32 0.0, %v1818
    %1820 = vmatmul.bf16.gmra.mxu0 %v1041
    %v1821 = vpop.f32.mrf.mxu0
    %v1822 = vadd.f32 0.0, %v1821
    %v1823 = vpop.f32.mrf.mxu0
    %v1824 = vadd.f32 0.0, %v1823
    %1825 = vmatmul.bf16.gmra.mxu0 %v1043
    %v1826 = vpop.f32.mrf.mxu0
    %v1827 = vadd.f32 0.0, %v1826
    %v1828 = vpop.f32.mrf.mxu0
    %1829 = vdwg.mxu0
    %1830 = vmatpush.bf16.msra.mxu0 %v1773
    %1831 = vmatpush.bf16.msra.mxu0 %v1771
    %1832 = vmatpush.bf16.msra.mxu0 %v1769
    %1833 = vmatpush.bf16.msra.mxu0 %v1767
    %1834 = vmatpush.bf16.msra.mxu0 %v1765
    %1835 = vmatpush.bf16.msra.mxu0 %v1763
    %1836 = vmatpush.bf16.msra.mxu0 %v1761
    %1837 = vmatpush.bf16.msra.mxu0 %v1759
    %1838 = vmatmul.bf16.gmra.mxu0 %v1040
    %v1839 = vpop.f32.mrf.mxu0
    %v1840 = vadd.f32 %v1817, %v1839
    %v1841 = vpop.f32.mrf.mxu0
    %v1842 = vadd.f32 %v1819, %v1841
    %1843 = vmatmul.bf16.gmra.mxu0 %v1042
    %v1844 = vpop.f32.mrf.mxu0
    %v1845 = vadd.f32 %v1822, %v1844
    %v1846 = vpop.f32.mrf.mxu0
    %v1847 = vadd.f32 %v1824, %v1846
    %1848 = vmatmul.bf16.gmra.mxu0 %v1044
    %v1849 = vpop.f32.mrf.mxu0
    %v1850 = vadd.f32 %v1827, %v1849
    %v1851 = vpop.f32.mrf.mxu0
    %1852 = vdwg.mxu0
    %1853 = vmatpush.bf16.msra.mxu0 %v1758
    %1854 = vmatpush.bf16.msra.mxu0 %v1756
    %1855 = vmatpush.bf16.msra.mxu0 %v1754
    %1856 = vmatpush.bf16.msra.mxu0 %v1752
    %1857 = vmatpush.bf16.msra.mxu0 %v1750
    %1858 = vmatpush.bf16.msra.mxu0 %v1748
    %1859 = vmatpush.bf16.msra.mxu0 %v1746
    %1860 = vmatpush.bf16.msra.mxu0 %v1744
    %1861 = vmatmul.bf16.gmra.mxu0 %v1039
    %v1862 = vpop.f32.mrf.mxu0
    %v1863 = vadd.f32 0.0, %v1862
    %v1864 = vpop.f32.mrf.mxu0
    %v1865 = vadd.f32 0.0, %v1864
    %1866 = vmatmul.bf16.gmra.mxu0 %v1041
    %v1867 = vpop.f32.mrf.mxu0
    %v1868 = vadd.f32 0.0, %v1867
    %v1869 = vpop.f32.mrf.mxu0
    %v1870 = vadd.f32 0.0, %v1869
    %1871 = vmatmul.bf16.gmra.mxu0 %v1043
    %v1872 = vpop.f32.mrf.mxu0
    %v1873 = vadd.f32 0.0, %v1872
    %v1874 = vpop.f32.mrf.mxu0
    %1875 = vdwg.mxu0
    %1876 = vmatpush.bf16.msra.mxu0 %v1774
    %1877 = vmatpush.bf16.msra.mxu0 %v1772
    %1878 = vmatpush.bf16.msra.mxu0 %v1770
    %1879 = vmatpush.bf16.msra.mxu0 %v1768
    %1880 = vmatpush.bf16.msra.mxu0 %v1766
    %1881 = vmatpush.bf16.msra.mxu0 %v1764
    %1882 = vmatpush.bf16.msra.mxu0 %v1762
    %1883 = vmatpush.bf16.msra.mxu0 %v1760
    %1884 = vmatmul.bf16.gmra.mxu0 %v1040
    %v1885 = vpop.f32.mrf.mxu0
    %v1886 = vadd.f32 %v1863, %v1885
    %v1887 = vpop.f32.mrf.mxu0
    %v1888 = vadd.f32 %v1865, %v1887
    %1889 = vmatmul.bf16.gmra.mxu0 %v1042
    %v1890 = vpop.f32.mrf.mxu0
    %v1891 = vadd.f32 %v1868, %v1890
    %v1892 = vpop.f32.mrf.mxu0
    %v1893 = vadd.f32 %v1870, %v1892
    %1894 = vmatmul.bf16.gmra.mxu0 %v1044
    %v1895 = vpop.f32.mrf.mxu0
    %v1896 = vadd.f32 %v1873, %v1895
    %v1897 = vpop.f32.mrf.mxu0
    %1898 = vdwg.mxu0
    %v1899 = vadd.f32 %v1555, %v1840
    %v1900 = vadd.f32 %v1601, %v1886
    %v1901 = vadd.f32 %v1557, %v1842
    %v1902 = vadd.f32 %v1603, %v1888
    %v1903 = vadd.f32 %v1560, %v1845
    %v1904 = vadd.f32 %v1606, %v1891
    %v1905 = vadd.f32 %v1562, %v1847
    %v1906 = vadd.f32 %v1608, %v1893
    %v1907 = vadd.f32 %v1565, %v1850
    %v1908 = vadd.f32 %v1611, %v1896
    %v1909 = vperm.slane %v62, 3
    %v1910 = vperm.slane %v63, 3
    %v1911 = vadd.f32 %v1899, %v1909
    %v1912 = vadd.f32 %v1900, %v1910
    %v1913 = vadd.f32 %v1901, %v1909
    %v1914 = vadd.f32 %v1902, %v1910
    %v1915 = vadd.f32 %v1903, %v1909
    %v1916 = vadd.f32 %v1904, %v1910
    %v1917 = vadd.f32 %v1905, %v1909
    %v1918 = vadd.f32 %v1906, %v1910
    %v1919 = vadd.f32 %v1907, %v1909
    %v1920 = vadd.f32 %v1908, %v1910
    %1921 = vmatpush.msra.mxu0 0.0
    %1922 = vmatpush.msra.mxu0 0.0
    %1923 = vmatpush.msra.mxu0 0.0
    %1924 = vmatpush.msra.mxu0 0.0
    %1925 = vmatpush.msra.mxu0 0.0
    %1926 = vmatpush.msra.mxu0 0.0
    %1927 = vmatpush.msra.mxu0 0.0
    %1928 = vmatpush.msra.mxu0 0.0
    %1929 = vmatpush.msra.mxu0 0.0
    %1930 = vmatpush.msra.mxu0 0.0
    %1931 = vmatpush.msra.mxu0 0.0
    %1932 = vmatpush.msra.mxu0 %v1919
    %1933 = vmatpush.msra.mxu0 %v1917
    %1934 = vmatpush.msra.mxu0 %v1915
    %1935 = vmatpush.msra.mxu0 %v1913
    %1936 = vmatpush.msra.mxu0 %v1911
    %1937 = vmatmul.f32.gmra.mxu0 %v515
    %v1938 = vpop.f32.mrf.mxu0
    %v1939 = vadd.f32 0.0, %v1938
    %1940 = vdwg.mxu0
    %1941 = vmatpush.msra.mxu0 0.0
    %1942 = vmatpush.msra.mxu0 0.0
    %1943 = vmatpush.msra.mxu0 0.0
    %1944 = vmatpush.msra.mxu0 0.0
    %1945 = vmatpush.msra.mxu0 0.0
    %1946 = vmatpush.msra.mxu0 0.0
    %1947 = vmatpush.msra.mxu0 0.0
    %1948 = vmatpush.msra.mxu0 0.0
    %1949 = vmatpush.msra.mxu0 0.0
    %1950 = vmatpush.msra.mxu0 0.0
    %1951 = vmatpush.msra.mxu0 0.0
    %1952 = vmatpush.msra.mxu0 %v1920
    %1953 = vmatpush.msra.mxu0 %v1918
    %1954 = vmatpush.msra.mxu0 %v1916
    %1955 = vmatpush.msra.mxu0 %v1914
    %1956 = vmatpush.msra.mxu0 %v1912
    %1957 = vmatmul.f32.gmra.mxu0 %v515
    %v1958 = vpop.f32.mrf.mxu0
    %v1959 = vadd.f32 0.0, %v1958
    %1960 = vdwg.mxu0
    %v1961 = vmul.f32 %v1911, %v1911
    %v1962 = vmul.f32 %v1912, %v1912
    %v1963 = vmul.f32 %v1913, %v1913
    %v1964 = vmul.f32 %v1914, %v1914
    %v1965 = vmul.f32 %v1915, %v1915
    %v1966 = vmul.f32 %v1916, %v1916
    %v1967 = vmul.f32 %v1917, %v1917
    %v1968 = vmul.f32 %v1918, %v1918
    %v1969 = vmul.f32 %v1919, %v1919
    %v1970 = vmul.f32 %v1920, %v1920
    %1971 = vmatpush.msra.mxu0 0.0
    %1972 = vmatpush.msra.mxu0 0.0
    %1973 = vmatpush.msra.mxu0 0.0
    %1974 = vmatpush.msra.mxu0 0.0
    %1975 = vmatpush.msra.mxu0 0.0
    %1976 = vmatpush.msra.mxu0 0.0
    %1977 = vmatpush.msra.mxu0 0.0
    %1978 = vmatpush.msra.mxu0 0.0
    %1979 = vmatpush.msra.mxu0 0.0
    %1980 = vmatpush.msra.mxu0 0.0
    %1981 = vmatpush.msra.mxu0 0.0
    %1982 = vmatpush.msra.mxu0 %v1969
    %1983 = vmatpush.msra.mxu0 %v1967
    %1984 = vmatpush.msra.mxu0 %v1965
    %1985 = vmatpush.msra.mxu0 %v1963
    %1986 = vmatpush.msra.mxu0 %v1961
    %1987 = vmatmul.f32.gmra.mxu0 %v515
    %v1988 = vpop.f32.mrf.mxu0
    %v1989 = vadd.f32 0.0, %v1988
    %1990 = vdwg.mxu0
    %1991 = vmatpush.msra.mxu0 0.0
    %1992 = vmatpush.msra.mxu0 0.0
    %1993 = vmatpush.msra.mxu0 0.0
    %1994 = vmatpush.msra.mxu0 0.0
    %1995 = vmatpush.msra.mxu0 0.0
    %1996 = vmatpush.msra.mxu0 0.0
    %1997 = vmatpush.msra.mxu0 0.0
    %1998 = vmatpush.msra.mxu0 0.0
    %1999 = vmatpush.msra.mxu0 0.0
    %2000 = vmatpush.msra.mxu0 0.0
    %2001 = vmatpush.msra.mxu0 0.0
    %2002 = vmatpush.msra.mxu0 %v1970
    %2003 = vmatpush.msra.mxu0 %v1968
    %2004 = vmatpush.msra.mxu0 %v1966
    %2005 = vmatpush.msra.mxu0 %v1964
    %2006 = vmatpush.msra.mxu0 %v1962
    %2007 = vmatmul.f32.gmra.mxu0 %v515
    %v2008 = vpop.f32.mrf.mxu0
    %v2009 = vadd.f32 0.0, %v2008
    %2010 = vdwg.mxu0
    %2011 = vmatpush.msra.mxu0 %v79
    %2012 = vmatpush.msra.mxu0 %v78
    %2013 = vmatpush.msra.mxu0 %v77
    %2014 = vmatpush.msra.mxu0 %v76
    %2015 = vmatpush.msra.mxu0 %v75
    %2016 = vmatpush.msra.mxu0 %v74
    %2017 = vmatpush.msra.mxu0 %v73
    %2018 = vmatpush.msra.mxu0 %v72
    %2019 = vmatpush.msra.mxu0 %v71
    %2020 = vmatpush.msra.mxu0 %v70
    %2021 = vmatpush.msra.mxu0 %v69
    %2022 = vmatpush.msra.mxu0 %v68
    %2023 = vmatpush.msra.mxu0 %v67
    %2024 = vmatpush.msra.mxu0 %v66
    %2025 = vmatpush.msra.mxu0 %v65
    %2026 = vmatpush.msra.mxu0 %v64
    %2027 = vmatmul.f32.gmra.mxu0 %v1939
    %v2028 = vpop.f32.mrf.mxu0
    %v2029 = vadd.f32 0.0, %v2028
    %2030 = vdwg.mxu0
    %2031 = vmatpush.msra.mxu0 %v95
    %2032 = vmatpush.msra.mxu0 %v94
    %2033 = vmatpush.msra.mxu0 %v93
    %2034 = vmatpush.msra.mxu0 %v92
    %2035 = vmatpush.msra.mxu0 %v91
    %2036 = vmatpush.msra.mxu0 %v90
    %2037 = vmatpush.msra.mxu0 %v89
    %2038 = vmatpush.msra.mxu0 %v88
    %2039 = vmatpush.msra.mxu0 %v87
    %2040 = vmatpush.msra.mxu0 %v86
    %2041 = vmatpush.msra.mxu0 %v85
    %2042 = vmatpush.msra.mxu0 %v84
    %2043 = vmatpush.msra.mxu0 %v83
    %2044 = vmatpush.msra.mxu0 %v82
    %2045 = vmatpush.msra.mxu0 %v81
    %2046 = vmatpush.msra.mxu0 %v80
    %2047 = vmatmul.f32.gmra.mxu0 %v1959
    %v2048 = vpop.f32.mrf.mxu0
    %v2049 = vadd.f32 %v2029, %v2048
    %2050 = vdwg.mxu0
    %2051 = vmatpush.msra.mxu0 %v79
    %2052 = vmatpush.msra.mxu0 %v78
    %2053 = vmatpush.msra.mxu0 %v77
    %2054 = vmatpush.msra.mxu0 %v76
    %2055 = vmatpush.msra.mxu0 %v75
    %2056 = vmatpush.msra.mxu0 %v74
    %2057 = vmatpush.msra.mxu0 %v73
    %2058 = vmatpush.msra.mxu0 %v72
    %2059 = vmatpush.msra.mxu0 %v71
    %2060 = vmatpush.msra.mxu0 %v70
    %2061 = vmatpush.msra.mxu0 %v69
    %2062 = vmatpush.msra.mxu0 %v68
    %2063 = vmatpush.msra.mxu0 %v67
    %2064 = vmatpush.msra.mxu0 %v66
    %2065 = vmatpush.msra.mxu0 %v65
    %2066 = vmatpush.msra.mxu0 %v64
    %2067 = vmatmul.f32.gmra.mxu0 %v1989
    %v2068 = vpop.f32.mrf.mxu0
    %v2069 = vadd.f32 0.0, %v2068
    %2070 = vdwg.mxu0
    %2071 = vmatpush.msra.mxu0 %v95
    %2072 = vmatpush.msra.mxu0 %v94
    %2073 = vmatpush.msra.mxu0 %v93
    %2074 = vmatpush.msra.mxu0 %v92
    %2075 = vmatpush.msra.mxu0 %v91
    %2076 = vmatpush.msra.mxu0 %v90
    %2077 = vmatpush.msra.mxu0 %v89
    %2078 = vmatpush.msra.mxu0 %v88
    %2079 = vmatpush.msra.mxu0 %v87
    %2080 = vmatpush.msra.mxu0 %v86
    %2081 = vmatpush.msra.mxu0 %v85
    %2082 = vmatpush.msra.mxu0 %v84
    %2083 = vmatpush.msra.mxu0 %v83
    %2084 = vmatpush.msra.mxu0 %v82
    %2085 = vmatpush.msra.mxu0 %v81
    %2086 = vmatpush.msra.mxu0 %v80
    %2087 = vmatmul.f32.gmra.mxu0 %v2009
    %v2088 = vpop.f32.mrf.mxu0
    %v2089 = vadd.f32 %v2069, %v2088
    %2090 = vdwg.mxu0
    %v2091 = vmul.f32 %v2049, 0.0078125
    %v2092 = vmul.f32 %v2089, 0.0078125
    %v2093 = vmul.f32 %v2091, %v2091
    %v2094 = vsub.f32 %v2092, %v2093
    %v2095 = vmax.f32 %v2094, 0.0
    %v2096 = vadd.f32 %v2095, 1e-05
    %v2097 = vrsqrt.pop %v2096
    %v2098 = vmul.f32 %v2097, %v2096
    %v2099 = vmul.f32 %v2098, %v2097
    %v2100 = vmul.f32 0.5, %v2099
    %v2101 = vsub.f32 1.5, %v2100
    %v2102 = vmul.f32 %v2097, %v2101
    %vm2103 = vweird.f32 %v2096
    %vm2104 = vweird.f32 %v2097
    %vm2105 = vmor %vm2103, %vm2104
    %v2106 = vsel %vm2105, %v2097, %v2102
    %v2108 = vsel %vm703, %v2091, 0
    %2110 = vmatpush.msra.mxu0 0.0
    %2111 = vmatpush.msra.mxu0 0.0
    %2112 = vmatpush.msra.mxu0 0.0
    %2113 = vmatpush.msra.mxu0 0.0
    %2114 = vmatpush.msra.mxu0 0.0
    %2115 = vmatpush.msra.mxu0 0.0
    %2116 = vmatpush.msra.mxu0 0.0
    %2117 = vmatpush.msra.mxu0 0.0
    %2118 = vmatpush.msra.mxu0 0.0
    %2119 = vmatpush.msra.mxu0 0.0
    %2120 = vmatpush.msra.mxu0 0.0
    %2121 = vmatpush.msra.mxu0 0.0
    %2122 = vmatpush.msra.mxu0 %v102
    %2123 = vmatpush.msra.mxu0 %v100
    %2124 = vmatpush.msra.mxu0 %v98
    %2125 = vmatpush.msra.mxu0 %v96
    %2126 = vmatmul.f32.gmra.mxu0 %v2108
    %v2127 = vpop.f32.mrf.mxu0
    %v2128 = vadd.f32 0.0, %v2127
    %2129 = vdwg.mxu0
    %2130 = vmatpush.msra.mxu0 0.0
    %2131 = vmatpush.msra.mxu0 0.0
    %2132 = vmatpush.msra.mxu0 0.0
    %2133 = vmatpush.msra.mxu0 0.0
    %2134 = vmatpush.msra.mxu0 0.0
    %2135 = vmatpush.msra.mxu0 0.0
    %2136 = vmatpush.msra.mxu0 0.0
    %2137 = vmatpush.msra.mxu0 0.0
    %2138 = vmatpush.msra.mxu0 0.0
    %2139 = vmatpush.msra.mxu0 0.0
    %2140 = vmatpush.msra.mxu0 0.0
    %2141 = vmatpush.msra.mxu0 0.0
    %2142 = vmatpush.msra.mxu0 %v103
    %2143 = vmatpush.msra.mxu0 %v101
    %2144 = vmatpush.msra.mxu0 %v99
    %2145 = vmatpush.msra.mxu0 %v97
    %2146 = vmatmul.f32.gmra.mxu0 %v2108
    %v2147 = vpop.f32.mrf.mxu0
    %v2148 = vadd.f32 0.0, %v2147
    %2149 = vdwg.mxu0
    %v2151 = vsel %vm703, %v2106, 0
    %2153 = vmatpush.msra.mxu0 0.0
    %2154 = vmatpush.msra.mxu0 0.0
    %2155 = vmatpush.msra.mxu0 0.0
    %2156 = vmatpush.msra.mxu0 0.0
    %2157 = vmatpush.msra.mxu0 0.0
    %2158 = vmatpush.msra.mxu0 0.0
    %2159 = vmatpush.msra.mxu0 0.0
    %2160 = vmatpush.msra.mxu0 0.0
    %2161 = vmatpush.msra.mxu0 0.0
    %2162 = vmatpush.msra.mxu0 0.0
    %2163 = vmatpush.msra.mxu0 0.0
    %2164 = vmatpush.msra.mxu0 0.0
    %2165 = vmatpush.msra.mxu0 %v102
    %2166 = vmatpush.msra.mxu0 %v100
    %2167 = vmatpush.msra.mxu0 %v98
    %2168 = vmatpush.msra.mxu0 %v96
    %2169 = vmatmul.f32.gmra.mxu0 %v2151
    %v2170 = vpop.f32.mrf.mxu0
    %v2171 = vadd.f32 0.0, %v2170
    %2172 = vdwg.mxu0
    %2173 = vmatpush.msra.mxu0 0.0
    %2174 = vmatpush.msra.mxu0 0.0
    %2175 = vmatpush.msra.mxu0 0.0
    %2176 = vmatpush.msra.mxu0 0.0
    %2177 = vmatpush.msra.mxu0 0.0
    %2178 = vmatpush.msra.mxu0 0.0
    %2179 = vmatpush.msra.mxu0 0.0
    %2180 = vmatpush.msra.mxu0 0.0
    %2181 = vmatpush.msra.mxu0 0.0
    %2182 = vmatpush.msra.mxu0 0.0
    %2183 = vmatpush.msra.mxu0 0.0
    %2184 = vmatpush.msra.mxu0 0.0
    %2185 = vmatpush.msra.mxu0 %v103
    %2186 = vmatpush.msra.mxu0 %v101
    %2187 = vmatpush.msra.mxu0 %v99
    %2188 = vmatpush.msra.mxu0 %v97
    %2189 = vmatmul.f32.gmra.mxu0 %v2151
    %v2190 = vpop.f32.mrf.mxu0
    %v2191 = vadd.f32 0.0, %v2190
    %2192 = vdwg.mxu0
    %v2193 = vperm.slane %v62, 4
    %v2194 = vperm.slane %v63, 4
    %v2195 = vmul.f32 %v2171, %v2193
    %v2196 = vmul.f32 %v2191, %v2194
    %v2197 = vmul.f32 %v2128, %v2195
    %v2198 = vmul.f32 %v2148, %v2196
    %v2199 = vperm.slane %v62, 5
    %v2200 = vperm.slane %v63, 5
    %v2201 = vsub.f32 %v2199, %v2197
    %v2202 = vsub.f32 %v2200, %v2198
    %v2204 = vsel %vm816, %v2195, 0
    %v2207 = vsel %vm816, %v2196, 0
    %2209 = vmatpush.msra.mxu0 0.0
    %2210 = vmatpush.msra.mxu0 0.0
    %2211 = vmatpush.msra.mxu0 0.0
    %2212 = vmatpush.msra.mxu0 0.0
    %2213 = vmatpush.msra.mxu0 0.0
    %2214 = vmatpush.msra.mxu0 0.0
    %2215 = vmatpush.msra.mxu0 0.0
    %2216 = vmatpush.msra.mxu0 0.0
    %2217 = vmatpush.msra.mxu0 0.0
    %2218 = vmatpush.msra.mxu0 0.0
    %2219 = vmatpush.msra.mxu0 0.0
    %2220 = vmatpush.msra.mxu0 0.0
    %2221 = vmatpush.msra.mxu0 0.0
    %2222 = vmatpush.msra.mxu0 0.0
    %2223 = vmatpush.msra.mxu0 0.0
    %2224 = vmatpush.msra.mxu0 %v2204
    %2225 = vmatmul.f32.gmra.mxu0 %v802
    %v2226 = vpop.f32.mrf.mxu0
    %v2227 = vadd.f32 0.0, %v2226
    %2228 = vmatmul.f32.gmra.mxu0 %v805
    %v2229 = vpop.f32.mrf.mxu0
    %v2230 = vadd.f32 0.0, %v2229
    %2231 = vmatmul.f32.gmra.mxu0 %v808
    %v2232 = vpop.f32.mrf.mxu0
    %v2233 = vadd.f32 0.0, %v2232
    %2234 = vmatmul.f32.gmra.mxu0 %v811
    %v2235 = vpop.f32.mrf.mxu0
    %v2236 = vadd.f32 0.0, %v2235
    %2237 = vmatmul.f32.gmra.mxu0 %v814
    %v2238 = vpop.f32.mrf.mxu0
    %v2239 = vadd.f32 0.0, %v2238
    %2240 = vdwg.mxu0
    %2241 = vmatpush.msra.mxu0 0.0
    %2242 = vmatpush.msra.mxu0 0.0
    %2243 = vmatpush.msra.mxu0 0.0
    %2244 = vmatpush.msra.mxu0 0.0
    %2245 = vmatpush.msra.mxu0 0.0
    %2246 = vmatpush.msra.mxu0 0.0
    %2247 = vmatpush.msra.mxu0 0.0
    %2248 = vmatpush.msra.mxu0 0.0
    %2249 = vmatpush.msra.mxu0 0.0
    %2250 = vmatpush.msra.mxu0 0.0
    %2251 = vmatpush.msra.mxu0 0.0
    %2252 = vmatpush.msra.mxu0 0.0
    %2253 = vmatpush.msra.mxu0 0.0
    %2254 = vmatpush.msra.mxu0 0.0
    %2255 = vmatpush.msra.mxu0 0.0
    %2256 = vmatpush.msra.mxu0 %v2207
    %2257 = vmatmul.f32.gmra.mxu0 %v802
    %v2258 = vpop.f32.mrf.mxu0
    %v2259 = vadd.f32 0.0, %v2258
    %2260 = vmatmul.f32.gmra.mxu0 %v805
    %v2261 = vpop.f32.mrf.mxu0
    %v2262 = vadd.f32 0.0, %v2261
    %2263 = vmatmul.f32.gmra.mxu0 %v808
    %v2264 = vpop.f32.mrf.mxu0
    %v2265 = vadd.f32 0.0, %v2264
    %2266 = vmatmul.f32.gmra.mxu0 %v811
    %v2267 = vpop.f32.mrf.mxu0
    %v2268 = vadd.f32 0.0, %v2267
    %2269 = vmatmul.f32.gmra.mxu0 %v814
    %v2270 = vpop.f32.mrf.mxu0
    %v2271 = vadd.f32 0.0, %v2270
    %2272 = vdwg.mxu0
    %v2274 = vsel %vm816, %v2201, 0
    %v2277 = vsel %vm816, %v2202, 0
    %2279 = vmatpush.msra.mxu0 0.0
    %2280 = vmatpush.msra.mxu0 0.0
    %2281 = vmatpush.msra.mxu0 0.0
    %2282 = vmatpush.msra.mxu0 0.0
    %2283 = vmatpush.msra.mxu0 0.0
    %2284 = vmatpush.msra.mxu0 0.0
    %2285 = vmatpush.msra.mxu0 0.0
    %2286 = vmatpush.msra.mxu0 0.0
    %2287 = vmatpush.msra.mxu0 0.0
    %2288 = vmatpush.msra.mxu0 0.0
    %2289 = vmatpush.msra.mxu0 0.0
    %2290 = vmatpush.msra.mxu0 0.0
    %2291 = vmatpush.msra.mxu0 0.0
    %2292 = vmatpush.msra.mxu0 0.0
    %2293 = vmatpush.msra.mxu0 0.0
    %2294 = vmatpush.msra.mxu0 %v2274
    %2295 = vmatmul.f32.gmra.mxu0 %v802
    %v2296 = vpop.f32.mrf.mxu0
    %v2297 = vadd.f32 0.0, %v2296
    %2298 = vmatmul.f32.gmra.mxu0 %v805
    %v2299 = vpop.f32.mrf.mxu0
    %v2300 = vadd.f32 0.0, %v2299
    %2301 = vmatmul.f32.gmra.mxu0 %v808
    %v2302 = vpop.f32.mrf.mxu0
    %v2303 = vadd.f32 0.0, %v2302
    %2304 = vmatmul.f32.gmra.mxu0 %v811
    %v2305 = vpop.f32.mrf.mxu0
    %v2306 = vadd.f32 0.0, %v2305
    %2307 = vmatmul.f32.gmra.mxu0 %v814
    %v2308 = vpop.f32.mrf.mxu0
    %v2309 = vadd.f32 0.0, %v2308
    %2310 = vdwg.mxu0
    %2311 = vmatpush.msra.mxu0 0.0
    %2312 = vmatpush.msra.mxu0 0.0
    %2313 = vmatpush.msra.mxu0 0.0
    %2314 = vmatpush.msra.mxu0 0.0
    %2315 = vmatpush.msra.mxu0 0.0
    %2316 = vmatpush.msra.mxu0 0.0
    %2317 = vmatpush.msra.mxu0 0.0
    %2318 = vmatpush.msra.mxu0 0.0
    %2319 = vmatpush.msra.mxu0 0.0
    %2320 = vmatpush.msra.mxu0 0.0
    %2321 = vmatpush.msra.mxu0 0.0
    %2322 = vmatpush.msra.mxu0 0.0
    %2323 = vmatpush.msra.mxu0 0.0
    %2324 = vmatpush.msra.mxu0 0.0
    %2325 = vmatpush.msra.mxu0 0.0
    %2326 = vmatpush.msra.mxu0 %v2277
    %2327 = vmatmul.f32.gmra.mxu0 %v802
    %v2328 = vpop.f32.mrf.mxu0
    %v2329 = vadd.f32 0.0, %v2328
    %2330 = vmatmul.f32.gmra.mxu0 %v805
    %v2331 = vpop.f32.mrf.mxu0
    %v2332 = vadd.f32 0.0, %v2331
    %2333 = vmatmul.f32.gmra.mxu0 %v808
    %v2334 = vpop.f32.mrf.mxu0
    %v2335 = vadd.f32 0.0, %v2334
    %2336 = vmatmul.f32.gmra.mxu0 %v811
    %v2337 = vpop.f32.mrf.mxu0
    %v2338 = vadd.f32 0.0, %v2337
    %2339 = vmatmul.f32.gmra.mxu0 %v814
    %v2340 = vpop.f32.mrf.mxu0
    %v2341 = vadd.f32 0.0, %v2340
    %2342 = vdwg.mxu0
    %v2343 = vmul.f32 %v1911, %v2227
    %v2344 = vmul.f32 %v1912, %v2259
    %v2345 = vmul.f32 %v1913, %v2230
    %v2346 = vmul.f32 %v1914, %v2262
    %v2347 = vmul.f32 %v1915, %v2233
    %v2348 = vmul.f32 %v1916, %v2265
    %v2349 = vmul.f32 %v1917, %v2236
    %v2350 = vmul.f32 %v1918, %v2268
    %v2351 = vmul.f32 %v1919, %v2239
    %v2352 = vmul.f32 %v1920, %v2271
    %v2353 = vadd.f32 %v2343, %v2297
    %v2354 = vadd.f32 %v2344, %v2329
    %v2355 = vadd.f32 %v2345, %v2300
    %v2356 = vadd.f32 %v2346, %v2332
    %v2357 = vadd.f32 %v2347, %v2303
    %v2358 = vadd.f32 %v2348, %v2335
    %v2359 = vadd.f32 %v2349, %v2306
    %v2360 = vadd.f32 %v2350, %v2338
    %v2361 = vadd.f32 %v2351, %v2309
    %v2362 = vadd.f32 %v2352, %v2341
    %v2363 = vmax.f32 %v2353, 0.0
    %v2364 = vmax.f32 %v2354, 0.0
    %v2365 = vmax.f32 %v2355, 0.0
    %v2366 = vmax.f32 %v2356, 0.0
    %v2367 = vmax.f32 %v2357, 0.0
    %v2368 = vmax.f32 %v2358, 0.0
    %v2369 = vmax.f32 %v2359, 0.0
    %v2370 = vmax.f32 %v2360, 0.0
    %v2371 = vmax.f32 %v2361, 0.0
    %v2372 = vmax.f32 %v2362, 0.0
    %v2373 = vpack.c.bf16 %v2365, %v2363
    %v2374 = vpack.c.bf16 %v2366, %v2364
    %v2375 = vpack.c.bf16 %v2369, %v2367
    %v2376 = vpack.c.bf16 %v2370, %v2368
    %v2377 = vpack.c.bf16 %v2371, %v2371
    %v2378 = vpack.c.bf16 %v2372, %v2372
    %v2379 = vrot.slane %v2363, 7
    %v2380 = vrot.slane %v2364, 7
    %v2381 = vrot.slane %v2365, 7
    %v2382 = vrot.slane %v2366, 7
    %v2383 = vrot.slane %v2367, 7
    %v2384 = vrot.slane %v2368, 7
    %v2385 = vrot.slane %v2369, 7
    %v2386 = vrot.slane %v2370, 7
    %v2387 = vrot.slane %v2371, 7
    %v2388 = vrot.slane %v2372, 7
    %v2389 = vsel %vm156, %v2385, %v2387
    %v2390 = vsel %vm156, %v2386, %v2388
    %v2391 = vsel %vm156, %v2383, %v2385
    %v2392 = vsel %vm156, %v2384, %v2386
    %v2393 = vsel %vm156, %v2381, %v2383
    %v2394 = vsel %vm156, %v2382, %v2384
    %v2395 = vsel %vm156, %v2379, %v2381
    %v2396 = vsel %vm156, %v2380, %v2382
    %v2397 = vsel %vm156, %v2387, %v2379
    %v2398 = vsel %vm156, %v2388, %v2380
    %v2399 = vpack.c.bf16 %v2395, %v2397
    %v2400 = vpack.c.bf16 %v2396, %v2398
    %v2401 = vpack.c.bf16 %v2391, %v2393
    %v2402 = vpack.c.bf16 %v2392, %v2394
    %v2403 = vpack.c.bf16 %v2389, %v2389
    %v2404 = vpack.c.bf16 %v2390, %v2390
    %v2405 = vrot.slane %v2363, 1
    %v2406 = vrot.slane %v2364, 1
    %v2407 = vrot.slane %v2365, 1
    %v2408 = vrot.slane %v2366, 1
    %v2409 = vrot.slane %v2367, 1
    %v2410 = vrot.slane %v2368, 1
    %v2411 = vrot.slane %v2369, 1
    %v2412 = vrot.slane %v2370, 1
    %v2413 = vrot.slane %v2371, 1
    %v2414 = vrot.slane %v2372, 1
    %v2415 = vsel %vm170, %v2411, %v2413
    %v2416 = vsel %vm170, %v2412, %v2414
    %v2417 = vsel %vm170, %v2409, %v2411
    %v2418 = vsel %vm170, %v2410, %v2412
    %v2419 = vsel %vm170, %v2407, %v2409
    %v2420 = vsel %vm170, %v2408, %v2410
    %v2421 = vsel %vm170, %v2405, %v2407
    %v2422 = vsel %vm170, %v2406, %v2408
    %v2423 = vsel %vm170, %v2413, %v2405
    %v2424 = vsel %vm170, %v2414, %v2406
    %v2425 = vpack.c.bf16 %v2419, %v2421
    %v2426 = vpack.c.bf16 %v2420, %v2422
    %v2427 = vpack.c.bf16 %v2415, %v2417
    %v2428 = vpack.c.bf16 %v2416, %v2418
    %v2429 = vpack.c.bf16 %v2423, %v2423
    %v2430 = vpack.c.bf16 %v2424, %v2424
    %v2431 = vld [vmem:[%s3] sm:$0xf]
    %v2432 = vld [vmem:[%s3 + $0x4] sm:$0xf]
    %v2433 = vld [vmem:[%s3 + $0x8] sm:$0xf]
    %v2434 = vld [vmem:[%s3 + $0xc] sm:$0xf]
    %v2435 = vld [vmem:[%s3 + $0x10] sm:$0xf]
    %v2436 = vld [vmem:[%s3 + $0x14] sm:$0xf]
    %v2437 = vld [vmem:[%s3 + $0x18] sm:$0xf]
    %v2438 = vld [vmem:[%s3 + $0x1c] sm:$0xf]
    %v2439 = vld [vmem:[%s3 + $0x20] sm:$0xf]
    %v2440 = vld [vmem:[%s3 + $0x24] sm:$0xf]
    %v2441 = vld [vmem:[%s3 + $0x28] sm:$0xf]
    %v2442 = vld [vmem:[%s3 + $0x2c] sm:$0xf]
    %v2443 = vld [vmem:[%s3 + $0x30] sm:$0xf]
    %v2444 = vld [vmem:[%s3 + $0x34] sm:$0xf]
    %v2445 = vld [vmem:[%s3 + $0x38] sm:$0xf]
    %v2446 = vld [vmem:[%s3 + $0x3c] sm:$0xf]
    %v2447 = vld [vmem:[%s3 + $0x40] sm:$0xf]
    %v2448 = vld [vmem:[%s3 + $0x44] sm:$0xf]
    %v2449 = vld [vmem:[%s3 + $0x48] sm:$0xf]
    %v2450 = vld [vmem:[%s3 + $0x4c] sm:$0xf]
    %v2451 = vld [vmem:[%s3 + $0x50] sm:$0xf]
    %v2452 = vld [vmem:[%s3 + $0x54] sm:$0xf]
    %v2453 = vld [vmem:[%s3 + $0x58] sm:$0xf]
    %v2454 = vld [vmem:[%s3 + $0x5c] sm:$0xf]
    %v2455 = vld [vmem:[%s3 + $0x60] sm:$0xf]
    %v2456 = vld [vmem:[%s3 + $0x64] sm:$0xf]
    %v2457 = vld [vmem:[%s3 + $0x68] sm:$0xf]
    %v2458 = vld [vmem:[%s3 + $0x6c] sm:$0xf]
    %v2459 = vld [vmem:[%s3 + $0x70] sm:$0xf]
    %v2460 = vld [vmem:[%s3 + $0x74] sm:$0xf]
    %v2461 = vld [vmem:[%s3 + $0x78] sm:$0xf]
    %v2462 = vld [vmem:[%s3 + $0x7c] sm:$0xf]
    %s2463 = scalar_lea.vmem %s3, 128
    %v2464 = vld [vmem:[%s2463] sm:$0xf]
    %v2465 = vld [vmem:[%s2463 + $0x4] sm:$0xf]
    %v2466 = vld [vmem:[%s2463 + $0x8] sm:$0xf]
    %v2467 = vld [vmem:[%s2463 + $0xc] sm:$0xf]
    %v2468 = vld [vmem:[%s2463 + $0x10] sm:$0xf]
    %v2469 = vld [vmem:[%s2463 + $0x14] sm:$0xf]
    %v2470 = vld [vmem:[%s2463 + $0x18] sm:$0xf]
    %v2471 = vld [vmem:[%s2463 + $0x1c] sm:$0xf]
    %v2472 = vld [vmem:[%s2463 + $0x20] sm:$0xf]
    %v2473 = vld [vmem:[%s2463 + $0x24] sm:$0xf]
    %v2474 = vld [vmem:[%s2463 + $0x28] sm:$0xf]
    %v2475 = vld [vmem:[%s2463 + $0x2c] sm:$0xf]
    %v2476 = vld [vmem:[%s2463 + $0x30] sm:$0xf]
    %v2477 = vld [vmem:[%s2463 + $0x34] sm:$0xf]
    %v2478 = vld [vmem:[%s2463 + $0x38] sm:$0xf]
    %v2479 = vld [vmem:[%s2463 + $0x3c] sm:$0xf]
    %v2480 = vld [vmem:[%s2463 + $0x40] sm:$0xf]
    %v2481 = vld [vmem:[%s2463 + $0x44] sm:$0xf]
    %v2482 = vld [vmem:[%s2463 + $0x48] sm:$0xf]
    %v2483 = vld [vmem:[%s2463 + $0x4c] sm:$0xf]
    %v2484 = vld [vmem:[%s2463 + $0x50] sm:$0xf]
    %v2485 = vld [vmem:[%s2463 + $0x54] sm:$0xf]
    %v2486 = vld [vmem:[%s2463 + $0x58] sm:$0xf]
    %v2487 = vld [vmem:[%s2463 + $0x5c] sm:$0xf]
    %v2488 = vld [vmem:[%s2463 + $0x60] sm:$0xf]
    %v2489 = vld [vmem:[%s2463 + $0x64] sm:$0xf]
    %v2490 = vld [vmem:[%s2463 + $0x68] sm:$0xf]
    %v2491 = vld [vmem:[%s2463 + $0x6c] sm:$0xf]
    %v2492 = vld [vmem:[%s2463 + $0x70] sm:$0xf]
    %v2493 = vld [vmem:[%s2463 + $0x74] sm:$0xf]
    %v2494 = vld [vmem:[%s2463 + $0x78] sm:$0xf]
    %v2495 = vld [vmem:[%s2463 + $0x7c] sm:$0xf]
    %v2528 = vunpack.c.l.b16 %v2464
    %v2529 = vunpack.c.l.b16 %v2465
    %v2530 = vunpack.c.l.b16 %v2466
    %v2531 = vunpack.c.l.b16 %v2467
    %v2532 = vunpack.c.l.b16 %v2468
    %v2533 = vunpack.c.l.b16 %v2469
    %v2534 = vunpack.c.l.b16 %v2470
    %v2535 = vunpack.c.l.b16 %v2471
    %v2536 = vunpack.c.l.b16 %v2472
    %v2537 = vunpack.c.l.b16 %v2473
    %v2538 = vunpack.c.l.b16 %v2474
    %v2539 = vunpack.c.l.b16 %v2475
    %v2540 = vunpack.c.l.b16 %v2476
    %v2541 = vunpack.c.l.b16 %v2477
    %v2542 = vunpack.c.l.b16 %v2478
    %v2543 = vunpack.c.l.b16 %v2479
    %v2544 = vunpack.c.l.b16 %v2480
    %v2545 = vunpack.c.l.b16 %v2481
    %v2546 = vunpack.c.l.b16 %v2482
    %v2547 = vunpack.c.l.b16 %v2483
    %v2548 = vunpack.c.l.b16 %v2484
    %v2549 = vunpack.c.l.b16 %v2485
    %v2550 = vunpack.c.l.b16 %v2486
    %v2551 = vunpack.c.l.b16 %v2487
    %v2552 = vunpack.c.l.b16 %v2488
    %v2553 = vunpack.c.l.b16 %v2489
    %v2554 = vunpack.c.l.b16 %v2490
    %v2555 = vunpack.c.l.b16 %v2491
    %v2556 = vunpack.c.l.b16 %v2492
    %v2557 = vunpack.c.l.b16 %v2493
    %v2558 = vunpack.c.l.b16 %v2494
    %v2559 = vunpack.c.l.b16 %v2495
    %v2560 = vpack.c.b16 %v2529, %v2528
    %v2561 = vpack.c.b16 %v2531, %v2530
    %v2562 = vpack.c.b16 %v2533, %v2532
    %v2563 = vpack.c.b16 %v2535, %v2534
    %v2564 = vpack.c.b16 %v2537, %v2536
    %v2565 = vpack.c.b16 %v2539, %v2538
    %v2566 = vpack.c.b16 %v2541, %v2540
    %v2567 = vpack.c.b16 %v2543, %v2542
    %v2568 = vpack.c.b16 %v2545, %v2544
    %v2569 = vpack.c.b16 %v2547, %v2546
    %v2570 = vpack.c.b16 %v2549, %v2548
    %v2571 = vpack.c.b16 %v2551, %v2550
    %v2572 = vpack.c.b16 %v2553, %v2552
    %v2573 = vpack.c.b16 %v2555, %v2554
    %v2574 = vpack.c.b16 %v2557, %v2556
    %v2575 = vpack.c.b16 %v2559, %v2558
    %2592 = vmatpush.bf16.msra.mxu0 %v2567
    %2593 = vmatpush.bf16.msra.mxu0 %v2566
    %2594 = vmatpush.bf16.msra.mxu0 %v2565
    %2595 = vmatpush.bf16.msra.mxu0 %v2564
    %2596 = vmatpush.bf16.msra.mxu0 %v2563
    %2597 = vmatpush.bf16.msra.mxu0 %v2562
    %2598 = vmatpush.bf16.msra.mxu0 %v2561
    %2599 = vmatpush.bf16.msra.mxu0 %v2560
    %2600 = vmatmul.bf16.gmra.mxu0 %v2373
    %v2601 = vpop.f32.mrf.mxu0
    %v2602 = vadd.f32 0.0, %v2601
    %v2603 = vpop.f32.mrf.mxu0
    %v2604 = vadd.f32 0.0, %v2603
    %2605 = vmatmul.bf16.gmra.mxu0 %v2375
    %v2606 = vpop.f32.mrf.mxu0
    %v2607 = vadd.f32 0.0, %v2606
    %v2608 = vpop.f32.mrf.mxu0
    %v2609 = vadd.f32 0.0, %v2608
    %2610 = vmatmul.bf16.gmra.mxu0 %v2377
    %v2611 = vpop.f32.mrf.mxu0
    %v2612 = vadd.f32 0.0, %v2611
    %v2613 = vpop.f32.mrf.mxu0
    %2614 = vdwg.mxu0
    %2615 = vmatpush.bf16.msra.mxu0 %v2575
    %2616 = vmatpush.bf16.msra.mxu0 %v2574
    %2617 = vmatpush.bf16.msra.mxu0 %v2573
    %2618 = vmatpush.bf16.msra.mxu0 %v2572
    %2619 = vmatpush.bf16.msra.mxu0 %v2571
    %2620 = vmatpush.bf16.msra.mxu0 %v2570
    %2621 = vmatpush.bf16.msra.mxu0 %v2569
    %2622 = vmatpush.bf16.msra.mxu0 %v2568
    %2623 = vmatmul.bf16.gmra.mxu0 %v2374
    %v2624 = vpop.f32.mrf.mxu0
    %v2625 = vadd.f32 %v2602, %v2624
    %v2626 = vpop.f32.mrf.mxu0
    %v2627 = vadd.f32 %v2604, %v2626
    %2628 = vmatmul.bf16.gmra.mxu0 %v2376
    %v2629 = vpop.f32.mrf.mxu0
    %v2630 = vadd.f32 %v2607, %v2629
    %v2631 = vpop.f32.mrf.mxu0
    %v2632 = vadd.f32 %v2609, %v2631
    %2633 = vmatmul.bf16.gmra.mxu0 %v2378
    %v2634 = vpop.f32.mrf.mxu0
    %v2635 = vadd.f32 %v2612, %v2634
    %v2636 = vpop.f32.mrf.mxu0
    %2637 = vdwg.mxu0
    %v2670 = vunpack.c.l.b16 %v2431
    %v2671 = vunpack.c.l.b16 %v2432
    %v2672 = vunpack.c.l.b16 %v2433
    %v2673 = vunpack.c.l.b16 %v2434
    %v2674 = vunpack.c.l.b16 %v2435
    %v2675 = vunpack.c.l.b16 %v2436
    %v2676 = vunpack.c.l.b16 %v2437
    %v2677 = vunpack.c.l.b16 %v2438
    %v2678 = vunpack.c.l.b16 %v2439
    %v2679 = vunpack.c.l.b16 %v2440
    %v2680 = vunpack.c.l.b16 %v2441
    %v2681 = vunpack.c.l.b16 %v2442
    %v2682 = vunpack.c.l.b16 %v2443
    %v2683 = vunpack.c.l.b16 %v2444
    %v2684 = vunpack.c.l.b16 %v2445
    %v2685 = vunpack.c.l.b16 %v2446
    %v2686 = vunpack.c.l.b16 %v2447
    %v2687 = vunpack.c.l.b16 %v2448
    %v2688 = vunpack.c.l.b16 %v2449
    %v2689 = vunpack.c.l.b16 %v2450
    %v2690 = vunpack.c.l.b16 %v2451
    %v2691 = vunpack.c.l.b16 %v2452
    %v2692 = vunpack.c.l.b16 %v2453
    %v2693 = vunpack.c.l.b16 %v2454
    %v2694 = vunpack.c.l.b16 %v2455
    %v2695 = vunpack.c.l.b16 %v2456
    %v2696 = vunpack.c.l.b16 %v2457
    %v2697 = vunpack.c.l.b16 %v2458
    %v2698 = vunpack.c.l.b16 %v2459
    %v2699 = vunpack.c.l.b16 %v2460
    %v2700 = vunpack.c.l.b16 %v2461
    %v2701 = vunpack.c.l.b16 %v2462
    %v2702 = vpack.c.b16 %v2671, %v2670
    %v2703 = vpack.c.b16 %v2673, %v2672
    %v2704 = vpack.c.b16 %v2675, %v2674
    %v2705 = vpack.c.b16 %v2677, %v2676
    %v2706 = vpack.c.b16 %v2679, %v2678
    %v2707 = vpack.c.b16 %v2681, %v2680
    %v2708 = vpack.c.b16 %v2683, %v2682
    %v2709 = vpack.c.b16 %v2685, %v2684
    %v2710 = vpack.c.b16 %v2687, %v2686
    %v2711 = vpack.c.b16 %v2689, %v2688
    %v2712 = vpack.c.b16 %v2691, %v2690
    %v2713 = vpack.c.b16 %v2693, %v2692
    %v2714 = vpack.c.b16 %v2695, %v2694
    %v2715 = vpack.c.b16 %v2697, %v2696
    %v2716 = vpack.c.b16 %v2699, %v2698
    %v2717 = vpack.c.b16 %v2701, %v2700
    %2734 = vmatpush.bf16.msra.mxu0 %v2709
    %2735 = vmatpush.bf16.msra.mxu0 %v2708
    %2736 = vmatpush.bf16.msra.mxu0 %v2707
    %2737 = vmatpush.bf16.msra.mxu0 %v2706
    %2738 = vmatpush.bf16.msra.mxu0 %v2705
    %2739 = vmatpush.bf16.msra.mxu0 %v2704
    %2740 = vmatpush.bf16.msra.mxu0 %v2703
    %2741 = vmatpush.bf16.msra.mxu0 %v2702
    %2742 = vmatmul.bf16.gmra.mxu0 %v2399
    %v2743 = vpop.f32.mrf.mxu0
    %v2744 = vadd.f32 %v2625, %v2743
    %v2745 = vpop.f32.mrf.mxu0
    %v2746 = vadd.f32 %v2627, %v2745
    %2747 = vmatmul.bf16.gmra.mxu0 %v2401
    %v2748 = vpop.f32.mrf.mxu0
    %v2749 = vadd.f32 %v2630, %v2748
    %v2750 = vpop.f32.mrf.mxu0
    %v2751 = vadd.f32 %v2632, %v2750
    %2752 = vmatmul.bf16.gmra.mxu0 %v2403
    %v2753 = vpop.f32.mrf.mxu0
    %v2754 = vadd.f32 %v2635, %v2753
    %v2755 = vpop.f32.mrf.mxu0
    %2756 = vdwg.mxu0
    %2757 = vmatpush.bf16.msra.mxu0 %v2717
    %2758 = vmatpush.bf16.msra.mxu0 %v2716
    %2759 = vmatpush.bf16.msra.mxu0 %v2715
    %2760 = vmatpush.bf16.msra.mxu0 %v2714
    %2761 = vmatpush.bf16.msra.mxu0 %v2713
    %2762 = vmatpush.bf16.msra.mxu0 %v2712
    %2763 = vmatpush.bf16.msra.mxu0 %v2711
    %2764 = vmatpush.bf16.msra.mxu0 %v2710
    %2765 = vmatmul.bf16.gmra.mxu0 %v2400
    %v2766 = vpop.f32.mrf.mxu0
    %v2767 = vadd.f32 %v2744, %v2766
    %v2768 = vpop.f32.mrf.mxu0
    %v2769 = vadd.f32 %v2746, %v2768
    %2770 = vmatmul.bf16.gmra.mxu0 %v2402
    %v2771 = vpop.f32.mrf.mxu0
    %v2772 = vadd.f32 %v2749, %v2771
    %v2773 = vpop.f32.mrf.mxu0
    %v2774 = vadd.f32 %v2751, %v2773
    %2775 = vmatmul.bf16.gmra.mxu0 %v2404
    %v2776 = vpop.f32.mrf.mxu0
    %v2777 = vadd.f32 %v2754, %v2776
    %v2778 = vpop.f32.mrf.mxu0
    %2779 = vdwg.mxu0
    %s2780 = scalar_lea.vmem %s3, 256
    %v2781 = vld [vmem:[%s2780] sm:$0xf]
    %v2782 = vld [vmem:[%s2780 + $0x4] sm:$0xf]
    %v2783 = vld [vmem:[%s2780 + $0x8] sm:$0xf]
    %v2784 = vld [vmem:[%s2780 + $0xc] sm:$0xf]
    %v2785 = vld [vmem:[%s2780 + $0x10] sm:$0xf]
    %v2786 = vld [vmem:[%s2780 + $0x14] sm:$0xf]
    %v2787 = vld [vmem:[%s2780 + $0x18] sm:$0xf]
    %v2788 = vld [vmem:[%s2780 + $0x1c] sm:$0xf]
    %v2789 = vld [vmem:[%s2780 + $0x20] sm:$0xf]
    %v2790 = vld [vmem:[%s2780 + $0x24] sm:$0xf]
    %v2791 = vld [vmem:[%s2780 + $0x28] sm:$0xf]
    %v2792 = vld [vmem:[%s2780 + $0x2c] sm:$0xf]
    %v2793 = vld [vmem:[%s2780 + $0x30] sm:$0xf]
    %v2794 = vld [vmem:[%s2780 + $0x34] sm:$0xf]
    %v2795 = vld [vmem:[%s2780 + $0x38] sm:$0xf]
    %v2796 = vld [vmem:[%s2780 + $0x3c] sm:$0xf]
    %v2797 = vld [vmem:[%s2780 + $0x40] sm:$0xf]
    %v2798 = vld [vmem:[%s2780 + $0x44] sm:$0xf]
    %v2799 = vld [vmem:[%s2780 + $0x48] sm:$0xf]
    %v2800 = vld [vmem:[%s2780 + $0x4c] sm:$0xf]
    %v2801 = vld [vmem:[%s2780 + $0x50] sm:$0xf]
    %v2802 = vld [vmem:[%s2780 + $0x54] sm:$0xf]
    %v2803 = vld [vmem:[%s2780 + $0x58] sm:$0xf]
    %v2804 = vld [vmem:[%s2780 + $0x5c] sm:$0xf]
    %v2805 = vld [vmem:[%s2780 + $0x60] sm:$0xf]
    %v2806 = vld [vmem:[%s2780 + $0x64] sm:$0xf]
    %v2807 = vld [vmem:[%s2780 + $0x68] sm:$0xf]
    %v2808 = vld [vmem:[%s2780 + $0x6c] sm:$0xf]
    %v2809 = vld [vmem:[%s2780 + $0x70] sm:$0xf]
    %v2810 = vld [vmem:[%s2780 + $0x74] sm:$0xf]
    %v2811 = vld [vmem:[%s2780 + $0x78] sm:$0xf]
    %v2812 = vld [vmem:[%s2780 + $0x7c] sm:$0xf]
    %v2845 = vunpack.c.l.b16 %v2781
    %v2846 = vunpack.c.l.b16 %v2782
    %v2847 = vunpack.c.l.b16 %v2783
    %v2848 = vunpack.c.l.b16 %v2784
    %v2849 = vunpack.c.l.b16 %v2785
    %v2850 = vunpack.c.l.b16 %v2786
    %v2851 = vunpack.c.l.b16 %v2787
    %v2852 = vunpack.c.l.b16 %v2788
    %v2853 = vunpack.c.l.b16 %v2789
    %v2854 = vunpack.c.l.b16 %v2790
    %v2855 = vunpack.c.l.b16 %v2791
    %v2856 = vunpack.c.l.b16 %v2792
    %v2857 = vunpack.c.l.b16 %v2793
    %v2858 = vunpack.c.l.b16 %v2794
    %v2859 = vunpack.c.l.b16 %v2795
    %v2860 = vunpack.c.l.b16 %v2796
    %v2861 = vunpack.c.l.b16 %v2797
    %v2862 = vunpack.c.l.b16 %v2798
    %v2863 = vunpack.c.l.b16 %v2799
    %v2864 = vunpack.c.l.b16 %v2800
    %v2865 = vunpack.c.l.b16 %v2801
    %v2866 = vunpack.c.l.b16 %v2802
    %v2867 = vunpack.c.l.b16 %v2803
    %v2868 = vunpack.c.l.b16 %v2804
    %v2869 = vunpack.c.l.b16 %v2805
    %v2870 = vunpack.c.l.b16 %v2806
    %v2871 = vunpack.c.l.b16 %v2807
    %v2872 = vunpack.c.l.b16 %v2808
    %v2873 = vunpack.c.l.b16 %v2809
    %v2874 = vunpack.c.l.b16 %v2810
    %v2875 = vunpack.c.l.b16 %v2811
    %v2876 = vunpack.c.l.b16 %v2812
    %v2877 = vpack.c.b16 %v2846, %v2845
    %v2878 = vpack.c.b16 %v2848, %v2847
    %v2879 = vpack.c.b16 %v2850, %v2849
    %v2880 = vpack.c.b16 %v2852, %v2851
    %v2881 = vpack.c.b16 %v2854, %v2853
    %v2882 = vpack.c.b16 %v2856, %v2855
    %v2883 = vpack.c.b16 %v2858, %v2857
    %v2884 = vpack.c.b16 %v2860, %v2859
    %v2885 = vpack.c.b16 %v2862, %v2861
    %v2886 = vpack.c.b16 %v2864, %v2863
    %v2887 = vpack.c.b16 %v2866, %v2865
    %v2888 = vpack.c.b16 %v2868, %v2867
    %v2889 = vpack.c.b16 %v2870, %v2869
    %v2890 = vpack.c.b16 %v2872, %v2871
    %v2891 = vpack.c.b16 %v2874, %v2873
    %v2892 = vpack.c.b16 %v2876, %v2875
    %2909 = vmatpush.bf16.msra.mxu0 %v2884
    %2910 = vmatpush.bf16.msra.mxu0 %v2883
    %2911 = vmatpush.bf16.msra.mxu0 %v2882
    %2912 = vmatpush.bf16.msra.mxu0 %v2881
    %2913 = vmatpush.bf16.msra.mxu0 %v2880
    %2914 = vmatpush.bf16.msra.mxu0 %v2879
    %2915 = vmatpush.bf16.msra.mxu0 %v2878
    %2916 = vmatpush.bf16.msra.mxu0 %v2877
    %2917 = vmatmul.bf16.gmra.mxu0 %v2425
    %v2918 = vpop.f32.mrf.mxu0
    %v2919 = vadd.f32 0.0, %v2918
    %v2920 = vpop.f32.mrf.mxu0
    %v2921 = vadd.f32 0.0, %v2920
    %2922 = vmatmul.bf16.gmra.mxu0 %v2427
    %v2923 = vpop.f32.mrf.mxu0
    %v2924 = vadd.f32 0.0, %v2923
    %v2925 = vpop.f32.mrf.mxu0
    %v2926 = vadd.f32 0.0, %v2925
    %2927 = vmatmul.bf16.gmra.mxu0 %v2429
    %v2928 = vpop.f32.mrf.mxu0
    %v2929 = vadd.f32 0.0, %v2928
    %v2930 = vpop.f32.mrf.mxu0
    %2931 = vdwg.mxu0
    %2932 = vmatpush.bf16.msra.mxu0 %v2892
    %2933 = vmatpush.bf16.msra.mxu0 %v2891
    %2934 = vmatpush.bf16.msra.mxu0 %v2890
    %2935 = vmatpush.bf16.msra.mxu0 %v2889
    %2936 = vmatpush.bf16.msra.mxu0 %v2888
    %2937 = vmatpush.bf16.msra.mxu0 %v2887
    %2938 = vmatpush.bf16.msra.mxu0 %v2886
    %2939 = vmatpush.bf16.msra.mxu0 %v2885
    %2940 = vmatmul.bf16.gmra.mxu0 %v2426
    %v2941 = vpop.f32.mrf.mxu0
    %v2942 = vadd.f32 %v2919, %v2941
    %v2943 = vpop.f32.mrf.mxu0
    %v2944 = vadd.f32 %v2921, %v2943
    %2945 = vmatmul.bf16.gmra.mxu0 %v2428
    %v2946 = vpop.f32.mrf.mxu0
    %v2947 = vadd.f32 %v2924, %v2946
    %v2948 = vpop.f32.mrf.mxu0
    %v2949 = vadd.f32 %v2926, %v2948
    %2950 = vmatmul.bf16.gmra.mxu0 %v2430
    %v2951 = vpop.f32.mrf.mxu0
    %v2952 = vadd.f32 %v2929, %v2951
    %v2953 = vpop.f32.mrf.mxu0
    %2954 = vdwg.mxu0
    %v2955 = vadd.f32 %v2767, %v2942
    %v2956 = vadd.f32 %v2769, %v2944
    %v2957 = vadd.f32 %v2772, %v2947
    %v2958 = vadd.f32 %v2774, %v2949
    %v2959 = vadd.f32 %v2777, %v2952
    %v2960 = vperm.slane %v62, 6
    %v2961 = vadd.f32 %v2955, %v2960
    %v2962 = vadd.f32 %v2956, %v2960
    %v2963 = vadd.f32 %v2957, %v2960
    %v2964 = vadd.f32 %v2958, %v2960
    %v2965 = vadd.f32 %v2959, %v2960
    %v2966 = vxor.u32 %v2961, 2147483648
    %v2967 = vxor.u32 %v2962, 2147483648
    %v2968 = vxor.u32 %v2963, 2147483648
    %v2969 = vxor.u32 %v2964, 2147483648
    %v2970 = vxor.u32 %v2965, 2147483648
    %v2971 = vmul.f32 %v2966, 1.442695
    %v2972 = vpow.pop %v2971
    %v2973 = vmul.f32 %v2967, 1.442695
    %v2974 = vpow.pop %v2973
    %v2975 = vmul.f32 %v2968, 1.442695
    %v2976 = vpow.pop %v2975
    %v2977 = vmul.f32 %v2969, 1.442695
    %v2978 = vpow.pop %v2977
    %v2979 = vmul.f32 %v2970, 1.442695
    %v2980 = vpow.pop %v2979
    %v2981 = vadd.f32 %v2972, 1.0
    %v2982 = vadd.f32 %v2974, 1.0
    %v2983 = vadd.f32 %v2976, 1.0
    %v2984 = vadd.f32 %v2978, 1.0
    %v2985 = vadd.f32 %v2980, 1.0
    %v2986 = vrcp.pop %v2981
    %v2987 = vmul.f32 %v2981, %v2986
    %v2988 = vsub.f32 1.0, %v2987
    %v2989 = vmul.f32 %v2986, %v2988
    %v2990 = vadd.f32 %v2986, %v2989
    %vm2991 = vweird.f32 %v2981
    %vm2992 = vweird.f32 %v2986
    %vm2993 = vmor %vm2991, %vm2992
    %v2994 = vsel %vm2993, %v2986, %v2990
    %v2995 = vand.u32 2147483647, %v2981
    %vm2996 = vcmp.eq.f32.partialorder %v2995, 8.507059e+37
    %v2997 = vand.u32 %v2981, 2147483648
    %v2998 = vor.u32 1.1754944e-38, %v2997
    %v2999 = vsel %vm2996, %v2998, %v2994
    %v3000 = vmul.f32 1.0, %v2999
    %v3001 = vrcp.pop %v2982
    %v3002 = vmul.f32 %v2982, %v3001
    %v3003 = vsub.f32 1.0, %v3002
    %v3004 = vmul.f32 %v3001, %v3003
    %v3005 = vadd.f32 %v3001, %v3004
    %vm3006 = vweird.f32 %v2982
    %vm3007 = vweird.f32 %v3001
    %vm3008 = vmor %vm3006, %vm3007
    %v3009 = vsel %vm3008, %v3001, %v3005
    %v3010 = vand.u32 2147483647, %v2982
    %vm3011 = vcmp.eq.f32.partialorder %v3010, 8.507059e+37
    %v3012 = vand.u32 %v2982, 2147483648
    %v3013 = vor.u32 1.1754944e-38, %v3012
    %v3014 = vsel %vm3011, %v3013, %v3009
    %v3015 = vmul.f32 1.0, %v3014
    %v3016 = vrcp.pop %v2983
    %v3017 = vmul.f32 %v2983, %v3016
    %v3018 = vsub.f32 1.0, %v3017
    %v3019 = vmul.f32 %v3016, %v3018
    %v3020 = vadd.f32 %v3016, %v3019
    %vm3021 = vweird.f32 %v2983
    %vm3022 = vweird.f32 %v3016
    %vm3023 = vmor %vm3021, %vm3022
    %v3024 = vsel %vm3023, %v3016, %v3020
    %v3025 = vand.u32 2147483647, %v2983
    %vm3026 = vcmp.eq.f32.partialorder %v3025, 8.507059e+37
    %v3027 = vand.u32 %v2983, 2147483648
    %v3028 = vor.u32 1.1754944e-38, %v3027
    %v3029 = vsel %vm3026, %v3028, %v3024
    %v3030 = vmul.f32 1.0, %v3029
    %v3031 = vrcp.pop %v2984
    %v3032 = vmul.f32 %v2984, %v3031
    %v3033 = vsub.f32 1.0, %v3032
    %v3034 = vmul.f32 %v3031, %v3033
    %v3035 = vadd.f32 %v3031, %v3034
    %vm3036 = vweird.f32 %v2984
    %vm3037 = vweird.f32 %v3031
    %vm3038 = vmor %vm3036, %vm3037
    %v3039 = vsel %vm3038, %v3031, %v3035
    %v3040 = vand.u32 2147483647, %v2984
    %vm3041 = vcmp.eq.f32.partialorder %v3040, 8.507059e+37
    %v3042 = vand.u32 %v2984, 2147483648
    %v3043 = vor.u32 1.1754944e-38, %v3042
    %v3044 = vsel %vm3041, %v3043, %v3039
    %v3045 = vmul.f32 1.0, %v3044
    %v3046 = vrcp.pop %v2985
    %v3047 = vmul.f32 %v2985, %v3046
    %v3048 = vsub.f32 1.0, %v3047
    %v3049 = vmul.f32 %v3046, %v3048
    %v3050 = vadd.f32 %v3046, %v3049
    %vm3051 = vweird.f32 %v2985
    %vm3052 = vweird.f32 %v3046
    %vm3053 = vmor %vm3051, %vm3052
    %v3054 = vsel %vm3053, %v3046, %v3050
    %v3055 = vand.u32 2147483647, %v2985
    %vm3056 = vcmp.eq.f32.partialorder %v3055, 8.507059e+37
    %v3057 = vand.u32 %v2985, 2147483648
    %v3058 = vor.u32 1.1754944e-38, %v3057
    %v3059 = vsel %vm3056, %v3058, %v3054
    %v3060 = vmul.f32 1.0, %v3059
    %vm3061 = vcmask 64512
    %3062 = vst.msk [vmem:[%s7] sm:$0xff] %vm3061, %v3000
    %3063 = vst.msk [vmem:[%s7 + $0x8] sm:$0xff] %vm3061, %v3015
    %3064 = vst.msk [vmem:[%s7 + $0x10] sm:$0xff] %vm3061, %v3030
    %3065 = vst.msk [vmem:[%s7 + $0x18] sm:$0xff] %vm3061, %v3045
    %3066 = vst.msk [vmem:[%s7 + $0x20] sm:$0xff] %vm3061, %v3060
    // Predicated region
    $region38: #{classification_model_pallas.1} parent=1 // pred_check
      _
    $region39: #{classification_model_pallas.1} parent=1 // pred_check_branch
      %3068 = sbr.rel (0) target = $region41
    $region40: #{classification_model_pallas.1} parent=1 // pred_region
      _
    $region41: #{classification_model_pallas.1} parent=1 // pred_fallthru
      _
    // Predicated region
    $region42: #{classification_model_pallas.1} parent=1 // pred_check
      _
    $region43: #{classification_model_pallas.1} parent=1 // pred_check_branch
      %3070 = sbr.rel (0) target = $region45
    $region44: #{classification_model_pallas.1} parent=1 // pred_region
      _
    $region45: #{classification_model_pallas.1} parent=1 // pred_fallthru
      _
    %3071 = vsyncpa [#allocation3], 1
    %3072 = vsyncpa [#allocation5], 1

</llo_original>
